<compile_context>
chip_gen: v7x
topology: tpu7x:2x2x1
jax: 0.10.0
libtpu: 0.0.40
codegen_flags: <defaults>
</compile_context>

<pallas_src>
import functools
import math

import jax
import jax.numpy as jnp
import numpy as np
from jax.experimental import pallas as pl
from jax.experimental.pallas import tpu as pltpu


def _round_up(x, m):
    return (x + m - 1) // m * m


def _frf_kernel(lhs_ref, s_ref, b_ref, out_ref, *, scale, n_cols, projection):
    """One grid step: TR slab rows -> TR * SW output elements.

    lhs_ref: (TR, 3c)  c packed points per slab row (free reshape of (N, 3))
    s_ref:   (3c, SW)  per-lane projection weights (point/coord selector x W)
    b_ref:   (1,  SW)  per-lane phase offset: b[j] (cos lanes), b[j] - pi/2
                       (sin lanes)
    out_ref: (TR, SW)  lane-dense slab view of the (N, D) output
    """
    x = lhs_ref[...]                                  # (TR, 3c) f32
    s = s_ref[...]                                    # (3c, SW) f32
    if projection == "mxu":
        # v7x: the kernel is VALU-bound on the cosine; ride the idle MXU / vex
        # slot for the K=3c contraction.  Not the default path because f32
        # matmul accuracy depends on the backend's matmul-precision handling.
        phase = jnp.dot(x, s, preferred_element_type=jnp.float32) + b_ref[...]
    else:
        # Exact-f32 K=3c contraction as broadcast FMAs on the VPU (~1/3 of the
        # cosine's VALU work; unrolled at trace time).
        phase = b_ref[...]                            # (1, SW) -> broadcasts
        for t in range(n_cols):
            phase = phase + x[:, t : t + 1] * s[t : t + 1, :]
    # Single dense cosine = cat([cos, sin]) thanks to the folded -pi/2 shift.
    # TODO(synk): on v7x, a hand-rolled shared range-reduction sincos would cut
    # another ~30% of the VALU ops; left to XLA's cos for accuracy/safety.
    out_ref[...] = (jnp.cos(phase) * scale).astype(out_ref.dtype)


def fourier_random_features_3d(positions, W, b, *, num_freqs_per_scale=None,
                               out_dtype=jnp.float32, projection="vpu"):
    """positions: (N, 3) f32; W: (D/2, 3) f32; b: (D/2,) f32 -> (N, D)."""
    positions = positions.astype(jnp.float32)
    N, three = positions.shape
    assert three == 3
    half = int(W.shape[0])
    D = 2 * half
    if num_freqs_per_scale is None:
        # Module default has num_length_scales == 2.  Pass explicitly if the
        # module is configured differently (this only affects the scale).
        num_freqs_per_scale = max(1, half // 2)
    scale = math.sqrt(2.0 / num_freqs_per_scale)

    # ---- lane-dense slab geometry --------------------------------------
    g = math.gcd(D, 128)
    c = 128 // g                     # points packed per slab row
    SW = c * D                       # slab width in lanes (multiple of 128)

    # Per-lane tables (tiny, built once per call; resident in VMEM).
    lane = jnp.arange(SW)
    d = lane % D                                         # feature index
    j = jnp.where(d < half, d, d - half)                 # frequency row of W/b
    m = lane // D                                        # packed point id
    Wl = W.astype(jnp.float32)[j]                        # (SW, 3)
    rows = 3 * m[None, :] + jnp.arange(3)[:, None]       # (3, SW)
    S = jnp.zeros((3 * c, SW), jnp.float32).at[rows, lane[None, :]].set(Wl.T)
    B = (b.astype(jnp.float32)[j]
         - jnp.where(d >= half, jnp.float32(math.pi / 2), jnp.float32(0.0)))
    B = B.reshape(1, SW)

    # Positions packed c per slab row; pad only when N % c != 0 (< c rows).
    N_pad = _round_up(N, c)
    pos = positions
    if N_pad != N:
        pos = jnp.pad(pos, ((0, N_pad - N), (0, 0)))
    R = N_pad // c                                       # total slab rows
    lhs = pos.reshape(R, 3 * c)                          # free reshape

    # ---- tile sizing (generation-aware VMEM budget) ---------------------
    lane_pad_in = _round_up(3 * c, 128)                  # VMEM pad of lhs block
    per_row = 2 * 4 * (lane_pad_in + SW)                 # dbl-buffered in+out
    try:
        vmem_cap = int(getattr(pltpu.get_tpu_info(), "vmem_capacity_bytes",
                               64 << 20))
    except Exception:
        vmem_cap = 64 << 20                              # conservative (v7x/TC)
    io_budget = min(vmem_cap // 8, 8 << 20)
    tr_target = max(16, min(4096, (io_budget // per_row) // 16 * 16))

    num_tiles = max(1, pl.cdiv(R, tr_target))
    if R > 16:
        num_tiles = max(num_tiles, 2)        # both v7x cores + real pipelining
        if num_tiles % 2:
            num_tiles += 1                   # even split across the 2 TCs
    if num_tiles == 1:
        TR = R                               # single block == full dim
    else:
        TR = min(_round_up(pl.cdiv(R, num_tiles), 16), _round_up(R, 16))
    grid_n = pl.cdiv(R, TR)                  # ragged last block handled by Pallas

    vmem_need = TR * per_row + 4 * (3 * c + 1) * SW + (1 << 20)
    vmem_limit = int(min(vmem_need + (8 << 20), int(vmem_cap * 0.9)))
    vmem_limit = max(vmem_limit, vmem_need)

    kernel = functools.partial(_frf_kernel, scale=scale, n_cols=3 * c,
                               projection=projection)
    out_slab = pl.pallas_call(
        kernel,
        out_shape=jax.ShapeDtypeStruct((R, SW), out_dtype),
        grid_spec=pltpu.PrefetchScalarGridSpec(
            num_scalar_prefetch=0,
            grid=(grid_n,),
            in_specs=[
                pl.BlockSpec((TR, 3 * c), lambda i: (i, 0)),   # packed points
                pl.BlockSpec((3 * c, SW), lambda i: (0, 0)),   # S (resident)
                pl.BlockSpec((1, SW), lambda i: (0, 0)),       # B (resident)
            ],
            # TODO(synk): on v5e, if xprof still shows store-side gaps, try
            # pipeline_mode=pl.Buffered(3) on this out_spec.
            out_specs=pl.BlockSpec((TR, SW), lambda i: (i, 0)),
        ),
        compiler_params=pltpu.CompilerParams(
            dimension_semantics=("parallel",),
            vmem_limit_bytes=vmem_limit),
    )(lhs, S, B)

    out = out_slab.reshape(N_pad, D)         # free: slab is row-major (N, D)
    return out[:N] if N_pad != N else out


def init_params(key, embedding_dim):
    """Deterministic re-implementation of the module __init__ (no .pt load)."""
    assert embedding_dim % 2 == 0
    num_length_scales = 2
    num_freqs_per_scale = embedding_dim // (2 * num_length_scales)
    length_scales = np.logspace(np.log10(0.1), np.log10(3.0),
                                num=num_length_scales)
    kW, kb = jax.random.split(key)
    kWs = jax.random.split(kW, num_length_scales)
    W = jnp.concatenate(
        [jax.random.normal(kWs[i], (num_freqs_per_scale, 3), dtype=jnp.float32)
         * (1.0 / float(ls)) for i, ls in enumerate(length_scales)],
        axis=0)                                          # (D/2, 3)
    kbs = jax.random.split(kb, num_length_scales)
    b = jnp.concatenate(
        [jax.random.uniform(kbs[i], (num_freqs_per_scale,), dtype=jnp.float32)
         * 2.0 * math.pi for i in range(num_length_scales)],
        axis=0)                                          # (D/2,)
    return W, b


if __name__ == "__main__":
    key = jax.random.PRNGKey(0)
    k_param, k_pos = jax.random.split(key)

    embedding_dim = 64          # D; D/2 = 32, num_freqs_per_scale = 16
    num_length_scales = 2
    num_freqs_per_scale = embedding_dim // (2 * num_length_scales)
    N = 300                     # deliberately NOT a multiple of the tile size

    W, b = init_params(k_param, embedding_dim)
    positions = jax.random.normal(k_pos, (N, 3), dtype=jnp.float32) * 2.0

    out = fourier_random_features_3d(
        positions, W, b, num_freqs_per_scale=num_freqs_per_scale)
    out = jax.block_until_ready(out)

    # float64 numpy reference of the module forward.
    p64 = np.asarray(positions, dtype=np.float64)
    W64 = np.asarray(W, dtype=np.float64)
    b64 = np.asarray(b, dtype=np.float64)
    proj = p64 @ W64.T + b64
    ref = np.concatenate([np.cos(proj), np.sin(proj)], axis=-1)
    ref = ref * math.sqrt(2.0 / num_freqs_per_scale)

    assert out.shape == (N, embedding_dim)
    np.testing.assert_allclose(np.asarray(out), ref, rtol=1e-5, atol=5e-5)
    print("KERNEL_OK")
</pallas_src>

<mosaic_0001>
module attributes {stable_mosaic.version = 11 : i64} {
  func.func @_frf_kernel(%arg0: i32, %arg1: memref<80x6xf32, #tpu.memory_space<vmem>>, %arg2: memref<6x128xf32, #tpu.memory_space<vmem>>, %arg3: memref<1x128xf32, #tpu.memory_space<vmem>>, %arg4: memref<80x128xf32, #tpu.memory_space<vmem>>) attributes {dimension_semantics = [#tpu.dimension_semantics<parallel>], iteration_bounds = array<i64: 2>, scalar_prefetch = 0 : i64, scratch_operands = 0 : i64, tpu.core_type = #tpu.core_type<tc>, window_params = [{transform_indices = @transform_0, window_bounds = array<i64: 80, 6>}, {pipeline_mode = #tpu.pipeline_mode<synchronous>, transform_indices = @transform_1, window_bounds = array<i64: 6, 128>}, {pipeline_mode = #tpu.pipeline_mode<synchronous>, transform_indices = @transform_2, window_bounds = array<i64: 1, 128>}, {transform_indices = @transform_3, window_bounds = array<i64: 80, 128>}]} {
    %c0 = arith.constant 0 : index
    %c0_0 = arith.constant 0 : index
    %0 = vector.load %arg1[%c0, %c0_0] : memref<80x6xf32, #tpu.memory_space<vmem>>, vector<80x6xf32>
    %c0_1 = arith.constant 0 : index
    %c0_2 = arith.constant 0 : index
    %1 = vector.load %arg2[%c0_1, %c0_2] : memref<6x128xf32, #tpu.memory_space<vmem>>, vector<6x128xf32>
    %c0_3 = arith.constant 0 : index
    %c0_4 = arith.constant 0 : index
    %2 = vector.load %arg3[%c0_3, %c0_4] : memref<1x128xf32, #tpu.memory_space<vmem>>, vector<1x128xf32>
    %3 = vector.extract_strided_slice %0 {offsets = [0, 0], sizes = [80, 1], strides = [1, 1]} : vector<80x6xf32> to vector<80x1xf32>
    %4 = vector.extract_strided_slice %1 {offsets = [0, 0], sizes = [1, 128], strides = [1, 1]} : vector<6x128xf32> to vector<1x128xf32>
    %5 = vector.broadcast %3 : vector<80x1xf32> to vector<80x128xf32>
    %6 = vector.broadcast %4 : vector<1x128xf32> to vector<80x128xf32>
    %7 = arith.mulf %5, %6 : vector<80x128xf32>
    %8 = vector.broadcast %2 : vector<1x128xf32> to vector<80x128xf32>
    %9 = arith.addf %8, %7 : vector<80x128xf32>
    %10 = vector.extract_strided_slice %0 {offsets = [0, 1], sizes = [80, 1], strides = [1, 1]} : vector<80x6xf32> to vector<80x1xf32>
    %11 = vector.extract_strided_slice %1 {offsets = [1, 0], sizes = [1, 128], strides = [1, 1]} : vector<6x128xf32> to vector<1x128xf32>
    %12 = vector.broadcast %10 : vector<80x1xf32> to vector<80x128xf32>
    %13 = vector.broadcast %11 : vector<1x128xf32> to vector<80x128xf32>
    %14 = arith.mulf %12, %13 : vector<80x128xf32>
    %15 = arith.addf %9, %14 : vector<80x128xf32>
    %16 = vector.extract_strided_slice %0 {offsets = [0, 2], sizes = [80, 1], strides = [1, 1]} : vector<80x6xf32> to vector<80x1xf32>
    %17 = vector.extract_strided_slice %1 {offsets = [2, 0], sizes = [1, 128], strides = [1, 1]} : vector<6x128xf32> to vector<1x128xf32>
    %18 = vector.broadcast %16 : vector<80x1xf32> to vector<80x128xf32>
    %19 = vector.broadcast %17 : vector<1x128xf32> to vector<80x128xf32>
    %20 = arith.mulf %18, %19 : vector<80x128xf32>
    %21 = arith.addf %15, %20 : vector<80x128xf32>
    %22 = vector.extract_strided_slice %0 {offsets = [0, 3], sizes = [80, 1], strides = [1, 1]} : vector<80x6xf32> to vector<80x1xf32>
    %23 = vector.extract_strided_slice %1 {offsets = [3, 0], sizes = [1, 128], strides = [1, 1]} : vector<6x128xf32> to vector<1x128xf32>
    %24 = vector.broadcast %22 : vector<80x1xf32> to vector<80x128xf32>
    %25 = vector.broadcast %23 : vector<1x128xf32> to vector<80x128xf32>
    %26 = arith.mulf %24, %25 : vector<80x128xf32>
    %27 = arith.addf %21, %26 : vector<80x128xf32>
    %28 = vector.extract_strided_slice %0 {offsets = [0, 4], sizes = [80, 1], strides = [1, 1]} : vector<80x6xf32> to vector<80x1xf32>
    %29 = vector.extract_strided_slice %1 {offsets = [4, 0], sizes = [1, 128], strides = [1, 1]} : vector<6x128xf32> to vector<1x128xf32>
    %30 = vector.broadcast %28 : vector<80x1xf32> to vector<80x128xf32>
    %31 = vector.broadcast %29 : vector<1x128xf32> to vector<80x128xf32>
    %32 = arith.mulf %30, %31 : vector<80x128xf32>
    %33 = arith.addf %27, %32 : vector<80x128xf32>
    %34 = vector.extract_strided_slice %0 {offsets = [0, 5], sizes = [80, 1], strides = [1, 1]} : vector<80x6xf32> to vector<80x1xf32>
    %35 = vector.extract_strided_slice %1 {offsets = [5, 0], sizes = [1, 128], strides = [1, 1]} : vector<6x128xf32> to vector<1x128xf32>
    %36 = vector.broadcast %34 : vector<80x1xf32> to vector<80x128xf32>
    %37 = vector.broadcast %35 : vector<1x128xf32> to vector<80x128xf32>
    %38 = arith.mulf %36, %37 : vector<80x128xf32>
    %39 = arith.addf %33, %38 : vector<80x128xf32>
    %40 = math.cos %39 : vector<80x128xf32>
    %cst = arith.constant 0.353553385 : f32
    %41 = vector.broadcast %cst : f32 to vector<80x128xf32>
    %42 = arith.mulf %40, %41 : vector<80x128xf32>
    %c0_5 = arith.constant 0 : index
    %c0_6 = arith.constant 0 : index
    %43 = vector.load %arg4[%c0_5, %c0_6] : memref<80x128xf32, #tpu.memory_space<vmem>>, vector<80x128xf32>
    tpu.vector_store %arg4[%c0_5, %c0_6], %42 {strides = array<i32>} : memref<80x128xf32, #tpu.memory_space<vmem>>, vector<80x128xf32>,
    return
  }
  func.func @transform_0(%arg0: i32) -> (i32, i32) {
    %c0_i32 = arith.constant 0 : i32
    %c0_i32_0 = arith.constant 0 : i32
    return %arg0, %c0_i32 : i32, i32
  }
  func.func @transform_1(%arg0: i32) -> (i32, i32) {
    %c0_i32 = arith.constant 0 : i32
    %c0_i32_0 = arith.constant 0 : i32
    %c0_i32_1 = arith.constant 0 : i32
    return %c0_i32, %c0_i32_0 : i32, i32
  }
  func.func @transform_2(%arg0: i32) -> (i32, i32) {
    %c0_i32 = arith.constant 0 : i32
    %c0_i32_0 = arith.constant 0 : i32
    %c0_i32_1 = arith.constant 0 : i32
    return %c0_i32, %c0_i32_0 : i32, i32
  }
  func.func @transform_3(%arg0: i32) -> (i32, i32) {
    %c0_i32 = arith.constant 0 : i32
    %c0_i32_0 = arith.constant 0 : i32
    return %arg0, %c0_i32 : i32, i32
  }
}

</mosaic_0001>

<llo_original>
// kernel: tpu_custom_call.1
$region0: #{tpu_custom_call.1}
  #allocation0 [shape = 'u32[]', space=smem, size = 0x4, offset = 0x4, fixed_abs, tag = 'smem constant byte address 0x4 - core index']
  #allocation1 [shape = 'u32[144,128]{1,0:T(1,128)}', space=vmem, size = 0x12000, scoped, tag = 'internal scratch']
  %s0 = inlined_call_operand.vmem [shape: f32[150,6], index: 0, kind: input, shape index: {}]
  %s1 = inlined_call_operand.vmem [shape: f32[6,128], index: 1, kind: input, shape index: {}]
  %s2 = inlined_call_operand.vmem [shape: f32[1,128], index: 2, kind: input, shape index: {}]
  %s3 = inlined_call_operand.hbm [shape: f32[150,128], index: 3, kind: output, shape index: {}]
  %s4 = sld [smem:[#allocation0]]
  $region45: #{tpu_custom_call.1} parent=0
    _
  %s6 = ssub.s32 1, %s4
  %s7 = scalar_select 0, %s6, %s4
  $region1: #{tpu_custom_call.1} parent=0
    #allocation2 [shape = 'u8[81920]{0}', space=vmem, size = 0x14000, scoped, tag = 'output window, operand 0']
    #allocation3 [shape = 's32[2]{0}', space=sflag, size = 0x8, scoped, tag = 'scoped memory for tpu_custom_call.1']
    %8 = vsyncpa [#allocation3], 0
    %s9 = scalar_lea.sflag [#allocation3], 1
    %10 = vsyncpa %s9, 0
    loop: start=0, step=1, limit=4
    $region2: #{tpu_custom_call.1} parent=1 // loop_pre_header
      _
    $region3: #{tpu_custom_call.1} parent=1 // loop_header
      %s12 = sphi 0, %s16
      %p13 = scmp.ge.s32.totalorder %s12, 4
      %s22 = sphi 0, %s24
      %s25 = sphi 0, %s22
      %s26 = sphi 0, %s25
      %s42 = sphi 0, %s26
      %s46 = sphi 0, %s46
      %s48 = sphi 0, %s46
      %s49 = sphi 0, %s48
      %s63 = sphi 0, %s49
      %s67 = sphi 0, %s67
      %s69 = sphi 0, %s67
      %s70 = sphi 0, %s69
      %s84 = sphi 0, %s70
      %s90 = sphi 0, %s92
      %s93 = sphi 0, %s90
      %s94 = sphi 0, %s93
      %s110 = sphi 0, %s94
    $region4: #{tpu_custom_call.1} parent=1 // loop_header_branch
      %15 = sbr.rel (%p13) target = $region8
    $region5: #{tpu_custom_call.1} parent=1 // loop_body
      %s17 = ssub.s32 %s12, 1
      %s18 = ssub.s32 %s12, 2
      %s19 = sadd.s32 %s12, 1
      %s20 = ssub.s32 %s12, %s19
      %p21 = scmp.eq.s32.totalorder %s20, 0
      %s23 = sadd.s32 %s22, 1
      %s24 = scalar_select %p21, %s22, %s23
      %p27 = pneg %p21
      %p28 = scmp.eq.s32.totalorder %s12, 1
      %p29 = por %p27, %p28
      %p30 = scmp.ne.s32.totalorder %s22, %s25
      %p31 = scmp.eq.s32.totalorder %s12, 0
      %p32 = por %p30, %p31
      %p33 = scmp.ne.s32.totalorder %s22, %s25
      %p34 = scmp.eq.s32.totalorder %s17, 1
      %p35 = por %p33, %p34
      %p36 = scmp.ne.s32.totalorder %s25, %s26
      %p37 = scmp.eq.s32.totalorder %s17, 0
      %p38 = por %p36, %p37
      %p39 = scmp.ne.s32.totalorder %s25, %s26
      %p40 = scmp.eq.s32.totalorder %s18, 1
      %p41 = por %p39, %p40
      %p43 = scmp.ne.s32.totalorder %s26, %s42
      %p44 = scmp.eq.s32.totalorder %s18, 0
      %p45 = por %p43, %p44
      %s47 = sadd.s32 %s46, 1
      %p50 = scmp.eq.s32.totalorder %s12, 1
      %p51 = scmp.ne.s32.totalorder %s46, %s48
      %p52 = scmp.eq.s32.totalorder %s12, 0
      %p53 = por %p51, %p52
      %p54 = scmp.ne.s32.totalorder %s46, %s48
      %p55 = scmp.eq.s32.totalorder %s17, 1
      %p56 = por %p54, %p55
      %p57 = scmp.ne.s32.totalorder %s48, %s49
      %p58 = scmp.eq.s32.totalorder %s17, 0
      %p59 = por %p57, %p58
      %p60 = scmp.ne.s32.totalorder %s48, %s49
      %p61 = scmp.eq.s32.totalorder %s18, 1
      %p62 = por %p60, %p61
      %p64 = scmp.ne.s32.totalorder %s49, %s63
      %p65 = scmp.eq.s32.totalorder %s18, 0
      %p66 = por %p64, %p65
      %s68 = sadd.s32 %s67, 1
      %p71 = scmp.eq.s32.totalorder %s12, 1
      %p72 = scmp.ne.s32.totalorder %s67, %s69
      %p73 = scmp.eq.s32.totalorder %s12, 0
      %p74 = por %p72, %p73
      %p75 = scmp.ne.s32.totalorder %s67, %s69
      %p76 = scmp.eq.s32.totalorder %s17, 1
      %p77 = por %p75, %p76
      %p78 = scmp.ne.s32.totalorder %s69, %s70
      %p79 = scmp.eq.s32.totalorder %s17, 0
      %p80 = por %p78, %p79
      %p81 = scmp.ne.s32.totalorder %s69, %s70
      %p82 = scmp.eq.s32.totalorder %s18, 1
      %p83 = por %p81, %p82
      %p85 = scmp.ne.s32.totalorder %s70, %s84
      %p86 = scmp.eq.s32.totalorder %s18, 0
      %p87 = por %p85, %p86
      %s88 = ssub.s32 %s12, %s19
      %p89 = scmp.eq.s32.totalorder %s88, 0
      %s91 = sadd.s32 %s90, 1
      %s92 = scalar_select %p89, %s90, %s91
      %p95 = pneg %p89
      %p96 = scmp.eq.s32.totalorder %s12, 1
      %p97 = por %p95, %p96
      %p98 = scmp.ne.s32.totalorder %s90, %s93
      %p99 = scmp.eq.s32.totalorder %s12, 0
      %p100 = por %p98, %p99
      %p101 = scmp.ne.s32.totalorder %s90, %s93
      %p102 = scmp.eq.s32.totalorder %s17, 1
      %p103 = por %p101, %p102
      %p104 = scmp.ne.s32.totalorder %s93, %s94
      %p105 = scmp.eq.s32.totalorder %s17, 0
      %p106 = por %p104, %p105
      %p107 = scmp.ne.s32.totalorder %s93, %s94
      %p108 = scmp.eq.s32.totalorder %s18, 1
      %p109 = por %p107, %p108
      %p111 = scmp.ne.s32.totalorder %s94, %s110
      %p112 = scmp.eq.s32.totalorder %s18, 0
      %p113 = por %p111, %p112
      %p114 = scmp.le.s32.totalorder 1, %s12
      %p115 = scmp.lt.s32.totalorder %s12, 3
      %p116 = pnand %p114, %p115
      %p117 = pneg %p116
      // Predicated region
      $region9: #{tpu_custom_call.1} parent=5 // pred_check
        _
      $region10: #{tpu_custom_call.1} parent=5 // pred_check_branch
        %119 = sbr.rel (%p116) target = $region12
      $region11: #{tpu_custom_call.1} parent=5 // pred_region
        %s120 = ssub.s32 %s12, 1
        // Predicated region
        $region13: #{tpu_custom_call.1} parent=11 // pred_check
          %p121 = pneg %p59
        $region14: #{tpu_custom_call.1} parent=11 // pred_check_branch
          %123 = sbr.rel (%p121) target = $region16
        $region15: #{tpu_custom_call.1} parent=11 // pred_region
          _
        $region16: #{tpu_custom_call.1} parent=11 // pred_fallthru
          _
        // Predicated region
        $region17: #{tpu_custom_call.1} parent=11 // pred_check
          %p124 = pneg %p80
        $region18: #{tpu_custom_call.1} parent=11 // pred_check_branch
          %126 = sbr.rel (%p124) target = $region20
        $region19: #{tpu_custom_call.1} parent=11 // pred_region
          _
        $region20: #{tpu_custom_call.1} parent=11 // pred_fallthru
          _
      $region12: #{tpu_custom_call.1} parent=5 // pred_fallthru
        _
      %p127 = scmp.lt.s32.totalorder %s12, 2
      // Predicated region
      $region21: #{tpu_custom_call.1} parent=5 // pred_check
        %p128 = pneg %p127
      $region22: #{tpu_custom_call.1} parent=5 // pred_check_branch
        %130 = sbr.rel (%p128) target = $region24
      $region23: #{tpu_custom_call.1} parent=5 // pred_region
        // Predicated region
        $region25: #{tpu_custom_call.1} parent=23 // pred_check
          %p131 = pneg %p32
        $region26: #{tpu_custom_call.1} parent=23 // pred_check_branch
          %133 = sbr.rel (%p131) target = $region28
        $region27: #{tpu_custom_call.1} parent=23 // pred_region
          %s134 = smul.u32 10, %s12
          %s135 = ssub.s32 19, %s134
          %p136 = scmp.lt.s32.totalorder %s135, 10
          %s137 = scalar_select %p136, %s135, 10
          %s138 = smul.u32 128, %s137
          %p139 = scmp.lt.s32.totalorder %s134, 18
          %s140 = scalar_select %p139, %s134, 18
          %s141 = smul.addr %s140, 8
          %s142 = scalar_lea.vmem %s0, %s141
          %s143 = smul.u32 10, %s12
          %s144 = ssub.s32 19, %s143
          %p145 = scmp.lt.s32.totalorder %s144, 10
          %s146 = scalar_select %p145, %s144, 10
          %s147 = smul.u32 128, %s146
        $region28: #{tpu_custom_call.1} parent=23 // pred_fallthru
          _
      $region24: #{tpu_custom_call.1} parent=5 // pred_fallthru
        _
      %p148 = scmp.le.s32.totalorder 1, %s12
      %p149 = scmp.lt.s32.totalorder %s12, 3
      %p150 = pnand %p148, %p149
      %p151 = pneg %p150
      // Predicated region
      $region29: #{tpu_custom_call.1} parent=5 // pred_check
        _
      $region30: #{tpu_custom_call.1} parent=5 // pred_check_branch
        %153 = sbr.rel (%p150) target = $region32
      $region31: #{tpu_custom_call.1} parent=5 // pred_region
        %s154 = ssub.s32 %s12, 1
        %s155 = smul.u32 10, %s17
        %s156 = ssub.s32 19, %s155
        %p157 = scmp.lt.s32.totalorder %s156, 10
        %s158 = scalar_select %p157, %s156, 10
        %s159 = smul.u32 128, %s158
        %p160 = scmp.lt.s32.totalorder %s155, 18
        %s161 = scalar_select %p160, %s155, 18
        %s162 = smul.addr %s161, 8
        %s163 = scalar_lea.vmem %s0, %s162
        %p164 = pneg %p38
        %p165 = pneg %p35
        %p166 = pneg %p59
        %p167 = pneg %p56
        %p168 = pneg %p80
        %p169 = pneg %p77
        %p170 = pneg %p106
        %p171 = pneg %p103
        %s172 = sand.u32 %s93, 1
        %s173 = scalar_lea.sflag [#allocation3], %s172
        %s174 = sand.u32 %s93, 1
        %s175 = smul.addr %s174, 80
        %s176 = scalar_lea.vmem [#allocation2], %s175
        %s177 = smul.u32 10, %s17
        %s178 = ssub.s32 19, %s177
        %p179 = scmp.lt.s32.totalorder %s178, 10
        %s180 = scalar_select %p179, %s178, 10
        %s181 = smul.u32 128, %s180
        %p182 = scmp.lt.s32.totalorder %s177, 18
        %s183 = scalar_select %p182, %s177, 18
        %s184 = smul.addr %s183, 8
        %s185 = scalar_lea.vmem %s0, %s184
        %s186 = smul.u32 10, %s17
        %s187 = ssub.s32 19, %s186
        %p188 = scmp.lt.s32.totalorder %s187, 10
        %s189 = scalar_select %p188, %s187, 10
        %s190 = smul.u32 128, %s189
        %s191 = smul.u32 10, %s17
        %s192 = ssub.s32 19, %s191
        %p193 = scmp.lt.s32.totalorder %s192, 10
        %s194 = scalar_select %p193, %s192, 10
        %s195 = smul.u32 128, %s194
        %v196 = vld [vmem:[%s185] sm:$0xff]
        %v197 = vld [vmem:[%s185 + $0x8] sm:$0xff]
        %v198 = vld [vmem:[%s185 + $0x10] sm:$0xff]
        %v199 = vld [vmem:[%s185 + $0x18] sm:$0xff]
        %v200 = vld [vmem:[%s185 + $0x20] sm:$0xff]
        %v201 = vld [vmem:[%s185 + $0x28] sm:$0xff]
        %v202 = vld [vmem:[%s185 + $0x30] sm:$0xff]
        %v203 = vld [vmem:[%s185 + $0x38] sm:$0xff]
        %v204 = vld [vmem:[%s185 + $0x40] sm:$0xff]
        %v205 = vld [vmem:[%s185 + $0x48] sm:$0xff]
        %v206 = vld [vmem:[%s1] sm:$0x3f]
        %v207 = vld [vmem:[%s2] sm:$0x1]
        %209 = vset.pattern.permute.xlu0 0
        %210 = vperm.xlu0 %209, %v196
        %v211 = vpop.permute.xlu0 %210
        %214 = vset.pattern.permute.xlu0 0
        %215 = vperm.xlu0 %214, %v197
        %v216 = vpop.permute.xlu0 %215
        %219 = vset.pattern.permute.xlu0 0
        %220 = vperm.xlu0 %219, %v198
        %v221 = vpop.permute.xlu0 %220
        %224 = vset.pattern.permute.xlu0 0
        %225 = vperm.xlu0 %224, %v199
        %v226 = vpop.permute.xlu0 %225
        %229 = vset.pattern.permute.xlu0 0
        %230 = vperm.xlu0 %229, %v200
        %v231 = vpop.permute.xlu0 %230
        %234 = vset.pattern.permute.xlu0 0
        %235 = vperm.xlu0 %234, %v201
        %v236 = vpop.permute.xlu0 %235
        %239 = vset.pattern.permute.xlu0 0
        %240 = vperm.xlu0 %239, %v202
        %v241 = vpop.permute.xlu0 %240
        %244 = vset.pattern.permute.xlu0 0
        %245 = vperm.xlu0 %244, %v203
        %v246 = vpop.permute.xlu0 %245
        %249 = vset.pattern.permute.xlu0 0
        %250 = vperm.xlu0 %249, %v204
        %v251 = vpop.permute.xlu0 %250
        %254 = vset.pattern.permute.xlu0 0
        %255 = vperm.xlu0 %254, %v205
        %v256 = vpop.permute.xlu0 %255
        %v258 = vlaneseq
        %v259 = vshrl.u32 %v258, 7
        %v260 = vsub.s32 0, %v259
        %v261 = vrot.slane %v206, %v260
        %v262 = vmul.f32 %v211, %v261
        %v263 = vmul.f32 %v216, %v261
        %v264 = vmul.f32 %v221, %v261
        %v265 = vmul.f32 %v226, %v261
        %v266 = vmul.f32 %v231, %v261
        %v267 = vmul.f32 %v236, %v261
        %v268 = vmul.f32 %v241, %v261
        %v269 = vmul.f32 %v246, %v261
        %v270 = vmul.f32 %v251, %v261
        %v271 = vmul.f32 %v256, %v261
        %v273 = vlaneseq
        %v274 = vshrl.u32 %v273, 7
        %v275 = vsub.s32 0, %v274
        %v276 = vrot.slane %v207, %v275
        %v278 = vadd.f32 %v276, %v262
        %v279 = vadd.f32 %v276, %v263
        %v280 = vadd.f32 %v276, %v264
        %v281 = vadd.f32 %v276, %v265
        %v282 = vadd.f32 %v276, %v266
        %v283 = vadd.f32 %v276, %v267
        %v284 = vadd.f32 %v276, %v268
        %v285 = vadd.f32 %v276, %v269
        %v286 = vadd.f32 %v276, %v270
        %v287 = vadd.f32 %v276, %v271
        %288 = vset.pattern.permute.xlu0 1
        %289 = vperm.xlu0 %288, %v196
        %v290 = vpop.permute.xlu0 %289
        %292 = vset.pattern.permute.xlu0 1
        %293 = vperm.xlu0 %292, %v197
        %v294 = vpop.permute.xlu0 %293
        %296 = vset.pattern.permute.xlu0 1
        %297 = vperm.xlu0 %296, %v198
        %v298 = vpop.permute.xlu0 %297
        %300 = vset.pattern.permute.xlu0 1
        %301 = vperm.xlu0 %300, %v199
        %v302 = vpop.permute.xlu0 %301
        %304 = vset.pattern.permute.xlu0 1
        %305 = vperm.xlu0 %304, %v200
        %v306 = vpop.permute.xlu0 %305
        %308 = vset.pattern.permute.xlu0 1
        %309 = vperm.xlu0 %308, %v201
        %v310 = vpop.permute.xlu0 %309
        %312 = vset.pattern.permute.xlu0 1
        %313 = vperm.xlu0 %312, %v202
        %v314 = vpop.permute.xlu0 %313
        %316 = vset.pattern.permute.xlu0 1
        %317 = vperm.xlu0 %316, %v203
        %v318 = vpop.permute.xlu0 %317
        %320 = vset.pattern.permute.xlu0 1
        %321 = vperm.xlu0 %320, %v204
        %v322 = vpop.permute.xlu0 %321
        %324 = vset.pattern.permute.xlu0 1
        %325 = vperm.xlu0 %324, %v205
        %v326 = vpop.permute.xlu0 %325
        %v328 = vlaneseq
        %v329 = vshrl.u32 %v328, 7
        %v330 = vsub.s32 1, %v329
        %v331 = vrot.slane %v206, %v330
        %v332 = vmul.f32 %v290, %v331
        %v333 = vmul.f32 %v294, %v331
        %v334 = vmul.f32 %v298, %v331
        %v335 = vmul.f32 %v302, %v331
        %v336 = vmul.f32 %v306, %v331
        %v337 = vmul.f32 %v310, %v331
        %v338 = vmul.f32 %v314, %v331
        %v339 = vmul.f32 %v318, %v331
        %v340 = vmul.f32 %v322, %v331
        %v341 = vmul.f32 %v326, %v331
        %v342 = vadd.f32 %v278, %v332
        %v343 = vadd.f32 %v279, %v333
        %v344 = vadd.f32 %v280, %v334
        %v345 = vadd.f32 %v281, %v335
        %v346 = vadd.f32 %v282, %v336
        %v347 = vadd.f32 %v283, %v337
        %v348 = vadd.f32 %v284, %v338
        %v349 = vadd.f32 %v285, %v339
        %v350 = vadd.f32 %v286, %v340
        %v351 = vadd.f32 %v287, %v341
        %352 = vset.pattern.permute.xlu0 2
        %353 = vperm.xlu0 %352, %v196
        %v354 = vpop.permute.xlu0 %353
        %356 = vset.pattern.permute.xlu0 2
        %357 = vperm.xlu0 %356, %v197
        %v358 = vpop.permute.xlu0 %357
        %360 = vset.pattern.permute.xlu0 2
        %361 = vperm.xlu0 %360, %v198
        %v362 = vpop.permute.xlu0 %361
        %364 = vset.pattern.permute.xlu0 2
        %365 = vperm.xlu0 %364, %v199
        %v366 = vpop.permute.xlu0 %365
        %368 = vset.pattern.permute.xlu0 2
        %369 = vperm.xlu0 %368, %v200
        %v370 = vpop.permute.xlu0 %369
        %372 = vset.pattern.permute.xlu0 2
        %373 = vperm.xlu0 %372, %v201
        %v374 = vpop.permute.xlu0 %373
        %376 = vset.pattern.permute.xlu0 2
        %377 = vperm.xlu0 %376, %v202
        %v378 = vpop.permute.xlu0 %377
        %380 = vset.pattern.permute.xlu0 2
        %381 = vperm.xlu0 %380, %v203
        %v382 = vpop.permute.xlu0 %381
        %384 = vset.pattern.permute.xlu0 2
        %385 = vperm.xlu0 %384, %v204
        %v386 = vpop.permute.xlu0 %385
        %388 = vset.pattern.permute.xlu0 2
        %389 = vperm.xlu0 %388, %v205
        %v390 = vpop.permute.xlu0 %389
        %v392 = vlaneseq
        %v393 = vshrl.u32 %v392, 7
        %v394 = vsub.s32 2, %v393
        %v395 = vrot.slane %v206, %v394
        %v396 = vmul.f32 %v354, %v395
        %v397 = vmul.f32 %v358, %v395
        %v398 = vmul.f32 %v362, %v395
        %v399 = vmul.f32 %v366, %v395
        %v400 = vmul.f32 %v370, %v395
        %v401 = vmul.f32 %v374, %v395
        %v402 = vmul.f32 %v378, %v395
        %v403 = vmul.f32 %v382, %v395
        %v404 = vmul.f32 %v386, %v395
        %v405 = vmul.f32 %v390, %v395
        %v406 = vadd.f32 %v342, %v396
        %v407 = vadd.f32 %v343, %v397
        %v408 = vadd.f32 %v344, %v398
        %v409 = vadd.f32 %v345, %v399
        %v410 = vadd.f32 %v346, %v400
        %v411 = vadd.f32 %v347, %v401
        %v412 = vadd.f32 %v348, %v402
        %v413 = vadd.f32 %v349, %v403
        %v414 = vadd.f32 %v350, %v404
        %v415 = vadd.f32 %v351, %v405
        %416 = vset.pattern.permute.xlu0 3
        %417 = vperm.xlu0 %416, %v196
        %v418 = vpop.permute.xlu0 %417
        %420 = vset.pattern.permute.xlu0 3
        %421 = vperm.xlu0 %420, %v197
        %v422 = vpop.permute.xlu0 %421
        %424 = vset.pattern.permute.xlu0 3
        %425 = vperm.xlu0 %424, %v198
        %v426 = vpop.permute.xlu0 %425
        %428 = vset.pattern.permute.xlu0 3
        %429 = vperm.xlu0 %428, %v199
        %v430 = vpop.permute.xlu0 %429
        %432 = vset.pattern.permute.xlu0 3
        %433 = vperm.xlu0 %432, %v200
        %v434 = vpop.permute.xlu0 %433
        %436 = vset.pattern.permute.xlu0 3
        %437 = vperm.xlu0 %436, %v201
        %v438 = vpop.permute.xlu0 %437
        %440 = vset.pattern.permute.xlu0 3
        %441 = vperm.xlu0 %440, %v202
        %v442 = vpop.permute.xlu0 %441
        %444 = vset.pattern.permute.xlu0 3
        %445 = vperm.xlu0 %444, %v203
        %v446 = vpop.permute.xlu0 %445
        %448 = vset.pattern.permute.xlu0 3
        %449 = vperm.xlu0 %448, %v204
        %v450 = vpop.permute.xlu0 %449
        %452 = vset.pattern.permute.xlu0 3
        %453 = vperm.xlu0 %452, %v205
        %v454 = vpop.permute.xlu0 %453
        %v456 = vlaneseq
        %v457 = vshrl.u32 %v456, 7
        %v458 = vsub.s32 3, %v457
        %v459 = vrot.slane %v206, %v458
        %v460 = vmul.f32 %v418, %v459
        %v461 = vmul.f32 %v422, %v459
        %v462 = vmul.f32 %v426, %v459
        %v463 = vmul.f32 %v430, %v459
        %v464 = vmul.f32 %v434, %v459
        %v465 = vmul.f32 %v438, %v459
        %v466 = vmul.f32 %v442, %v459
        %v467 = vmul.f32 %v446, %v459
        %v468 = vmul.f32 %v450, %v459
        %v469 = vmul.f32 %v454, %v459
        %v470 = vadd.f32 %v406, %v460
        %v471 = vadd.f32 %v407, %v461
        %v472 = vadd.f32 %v408, %v462
        %v473 = vadd.f32 %v409, %v463
        %v474 = vadd.f32 %v410, %v464
        %v475 = vadd.f32 %v411, %v465
        %v476 = vadd.f32 %v412, %v466
        %v477 = vadd.f32 %v413, %v467
        %v478 = vadd.f32 %v414, %v468
        %v479 = vadd.f32 %v415, %v469
        %480 = vset.pattern.permute.xlu0 4
        %481 = vperm.xlu0 %480, %v196
        %v482 = vpop.permute.xlu0 %481
        %484 = vset.pattern.permute.xlu0 4
        %485 = vperm.xlu0 %484, %v197
        %v486 = vpop.permute.xlu0 %485
        %488 = vset.pattern.permute.xlu0 4
        %489 = vperm.xlu0 %488, %v198
        %v490 = vpop.permute.xlu0 %489
        %492 = vset.pattern.permute.xlu0 4
        %493 = vperm.xlu0 %492, %v199
        %v494 = vpop.permute.xlu0 %493
        %496 = vset.pattern.permute.xlu0 4
        %497 = vperm.xlu0 %496, %v200
        %v498 = vpop.permute.xlu0 %497
        %500 = vset.pattern.permute.xlu0 4
        %501 = vperm.xlu0 %500, %v201
        %v502 = vpop.permute.xlu0 %501
        %504 = vset.pattern.permute.xlu0 4
        %505 = vperm.xlu0 %504, %v202
        %v506 = vpop.permute.xlu0 %505
        %508 = vset.pattern.permute.xlu0 4
        %509 = vperm.xlu0 %508, %v203
        %v510 = vpop.permute.xlu0 %509
        %512 = vset.pattern.permute.xlu0 4
        %513 = vperm.xlu0 %512, %v204
        %v514 = vpop.permute.xlu0 %513
        %516 = vset.pattern.permute.xlu0 4
        %517 = vperm.xlu0 %516, %v205
        %v518 = vpop.permute.xlu0 %517
        %v520 = vlaneseq
        %v521 = vshrl.u32 %v520, 7
        %v522 = vsub.s32 4, %v521
        %v523 = vrot.slane %v206, %v522
        %v524 = vmul.f32 %v482, %v523
        %v525 = vmul.f32 %v486, %v523
        %v526 = vmul.f32 %v490, %v523
        %v527 = vmul.f32 %v494, %v523
        %v528 = vmul.f32 %v498, %v523
        %v529 = vmul.f32 %v502, %v523
        %v530 = vmul.f32 %v506, %v523
        %v531 = vmul.f32 %v510, %v523
        %v532 = vmul.f32 %v514, %v523
        %v533 = vmul.f32 %v518, %v523
        %v534 = vadd.f32 %v470, %v524
        %v535 = vadd.f32 %v471, %v525
        %v536 = vadd.f32 %v472, %v526
        %v537 = vadd.f32 %v473, %v527
        %v538 = vadd.f32 %v474, %v528
        %v539 = vadd.f32 %v475, %v529
        %v540 = vadd.f32 %v476, %v530
        %v541 = vadd.f32 %v477, %v531
        %v542 = vadd.f32 %v478, %v532
        %v543 = vadd.f32 %v479, %v533
        %544 = vset.pattern.permute.xlu0 5
        %545 = vperm.xlu0 %544, %v196
        %v546 = vpop.permute.xlu0 %545
        %548 = vset.pattern.permute.xlu0 5
        %549 = vperm.xlu0 %548, %v197
        %v550 = vpop.permute.xlu0 %549
        %552 = vset.pattern.permute.xlu0 5
        %553 = vperm.xlu0 %552, %v198
        %v554 = vpop.permute.xlu0 %553
        %556 = vset.pattern.permute.xlu0 5
        %557 = vperm.xlu0 %556, %v199
        %v558 = vpop.permute.xlu0 %557
        %560 = vset.pattern.permute.xlu0 5
        %561 = vperm.xlu0 %560, %v200
        %v562 = vpop.permute.xlu0 %561
        %564 = vset.pattern.permute.xlu0 5
        %565 = vperm.xlu0 %564, %v201
        %v566 = vpop.permute.xlu0 %565
        %568 = vset.pattern.permute.xlu0 5
        %569 = vperm.xlu0 %568, %v202
        %v570 = vpop.permute.xlu0 %569
        %572 = vset.pattern.permute.xlu0 5
        %573 = vperm.xlu0 %572, %v203
        %v574 = vpop.permute.xlu0 %573
        %576 = vset.pattern.permute.xlu0 5
        %577 = vperm.xlu0 %576, %v204
        %v578 = vpop.permute.xlu0 %577
        %580 = vset.pattern.permute.xlu0 5
        %581 = vperm.xlu0 %580, %v205
        %v582 = vpop.permute.xlu0 %581
        %v584 = vlaneseq
        %v585 = vshrl.u32 %v584, 7
        %v586 = vsub.s32 5, %v585
        %v587 = vrot.slane %v206, %v586
        %v588 = vmul.f32 %v546, %v587
        %v589 = vmul.f32 %v550, %v587
        %v590 = vmul.f32 %v554, %v587
        %v591 = vmul.f32 %v558, %v587
        %v592 = vmul.f32 %v562, %v587
        %v593 = vmul.f32 %v566, %v587
        %v594 = vmul.f32 %v570, %v587
        %v595 = vmul.f32 %v574, %v587
        %v596 = vmul.f32 %v578, %v587
        %v597 = vmul.f32 %v582, %v587
        %v598 = vadd.f32 %v534, %v588
        %v599 = vadd.f32 %v535, %v589
        %v600 = vadd.f32 %v536, %v590
        %v601 = vadd.f32 %v537, %v591
        %v602 = vadd.f32 %v538, %v592
        %v603 = vadd.f32 %v539, %v593
        %v604 = vadd.f32 %v540, %v594
        %v605 = vadd.f32 %v541, %v595
        %v606 = vadd.f32 %v542, %v596
        %v607 = vadd.f32 %v543, %v597
        %v608 = vand.u32 2147483647, %v598
        %vm609 = vcmp.le.f32.partialorder %v608, 0.7853982
        %vm610 = vcmp.lt.s32.totalorder %v598, 0
        %v611 = vand.u32 %v598, 2139095040
        %v612 = vshrl.u32 %v611, 23
        %v613 = vsub.s32 %v612, 127
        %v614 = vand.u32 2147483647, %v598
        %v615 = vand.u32 %v614, 8388607
        %v616 = vor.u32 %v615, 8388608
        %v617 = vsub.s32 0, %v616
        %v618 = vadd.s32 %v613, 1
        %vm619 = vcmp.gt.s32.totalorder %v618, 0
        %v620 = vsel %vm619, %v618, 0
        %v621 = vshrl.u32 %v620, 5
        %v622 = vand.u32 %v620, 31
        %v623 = vsub.s32 32, %v622
        %v624 = vshrl.u32 683565275, %v623
        %v625 = vshll.u32 683565275, %v622
        %v626 = vshrl.u32 2475754826, %v623
        %v627 = vor.u32 %v625, %v626
        %v628 = vshll.u32 2475754826, %v622
        %v629 = vshrl.u32 2131351028, %v623
        %v630 = vor.u32 %v628, %v629
        %v631 = vshll.u32 2131351028, %v622
        %v632 = vshrl.u32 2102212464, %v623
        %v633 = vor.u32 %v631, %v632
        %v634 = vshll.u32 2102212464, %v622
        %v635 = vshrl.u32 920167782, %v623
        %v636 = vor.u32 %v634, %v635
        %v637 = vshll.u32 920167782, %v622
        %v638 = vshrl.u32 1326507024, %v623
        %v639 = vor.u32 %v637, %v638
        %vm640 = vcmp.lt.s32.totalorder %v621, 1
        %vm641 = vcmp.lt.s32.totalorder %v621, 2
        %vm642 = vcmp.lt.s32.totalorder %v621, 3
        %vm643 = vcmp.lt.s32.totalorder %v621, 4
        %v644 = vsel %vm640, %v624, %v627
        %v645 = vsel %vm643, %v633, 2102212464
        %v646 = vsel %vm642, %v630, %v645
        %v647 = vsel %vm641, %v644, %v646
        %v648 = vsel %vm640, %v627, %v630
        %v649 = vsel %vm643, %v636, 920167782
        %v650 = vsel %vm642, %v633, %v649
        %v651 = vsel %vm641, %v648, %v650
        %v652 = vsel %vm640, %v630, %v633
        %v653 = vsel %vm643, %v639, 1326507024
        %v654 = vsel %vm642, %v636, %v653
        %v655 = vsel %vm641, %v652, %v654
        %v656 = vshll.u32 %v616, 8
        %v657 = vmul.u32.u64.compose %v656, %v655
        %v658 = vextract.low.u32 %v657
        %v659 = vextract.high.u32 %v657
        %v660 = vmul.u32.u64.compose %v656, %v651
        %v661 = vextract.low.u32 %v660
        %v662 = vextract.high.u32 %v660
        %v663 = vmul.u32 %v656, %v647
        %v664 = vadd.s32 %v659, %v661
        %vm665 = vc.u32 %v659, %v661
        %v666 = vadd.s32 %v662, 1
        %v667 = vsel %vm665, %v666, %v662
        %v668 = vadd.s32 %v663, %v667
        %v669 = vadd.s32 %v668, 536870912
        %v670 = vshrl.u32 %v669, 30
        %v671 = vshll.u32 %v670, 30
        %v672 = vsub.s32 %v668, %v671
        %vm673 = vcmp.lt.s32.totalorder %v672, 0
        %v674 = vsub.s32 0, %v672
        %v675 = vsel %vm673, %v674, %v672
        %v676 = vclz %v675
        %v677 = vsub.s32 %v676, 2
        %vm678 = vcmp.gt.s32.totalorder 0, %v677
        %v679 = vsel %vm678, 0, %v677
        %v680 = vsub.s32 32, %v679
        %v681 = vshll.u32 %v672, %v679
        %v682 = vshrl.u32 %v664, %v680
        %v683 = vor.u32 %v681, %v682
        %v684 = vsub.s32 4294967266, %v679
        %v685 = vadd.s32 %v684, 127
        %v686 = vshll.u32 %v685, 23
        %v687 = vor.u32 4788187, %v686
        %v688 = vand.u32 2147483647, %v687
        %v690 = vcvt.s32.f32 %v683
        %v691 = vmul.f32 %v690, %v688
        %v692 = vxor.u32 %v691, 2147483648
        %v693 = vsel %vm610, %v692, %v691
        %v694 = vsub.s32 4, %v670
        %v695 = vsel %vm610, %v694, %v670
        %v696 = vsel %vm609, %v598, %v693
        %v697 = vsel %vm609, 0, %v695
        %v698 = vcosq.f32.pop %v696
        %v699 = vsinq.f32.pop %v696
        %vm700 = vweird.f32 %v598
        %v701 = vand.u32 %v697, 3
        %vm702 = vcmp.lt.s32.totalorder %v701, 2
        %vm703 = vcmp.eq.s32.totalorder %v701, 0
        %v704 = vxor.u32 %v699, 2147483648
        %v705 = vsel %vm703, %v698, %v704
        %vm706 = vcmp.eq.s32.totalorder %v701, 2
        %v707 = vxor.u32 %v698, 2147483648
        %v708 = vsel %vm706, %v707, %v699
        %v709 = vsel %vm702, %v705, %v708
        %v710 = vsel %vm700, nan, %v709
        %v711 = vand.u32 2147483647, %v599
        %vm712 = vcmp.le.f32.partialorder %v711, 0.7853982
        %vm713 = vcmp.lt.s32.totalorder %v599, 0
        %v714 = vand.u32 %v599, 2139095040
        %v715 = vshrl.u32 %v714, 23
        %v716 = vsub.s32 %v715, 127
        %v717 = vand.u32 2147483647, %v599
        %v718 = vand.u32 %v717, 8388607
        %v719 = vor.u32 %v718, 8388608
        %v720 = vsub.s32 0, %v719
        %v721 = vadd.s32 %v716, 1
        %vm722 = vcmp.gt.s32.totalorder %v721, 0
        %v723 = vsel %vm722, %v721, 0
        %v724 = vshrl.u32 %v723, 5
        %v725 = vand.u32 %v723, 31
        %v726 = vsub.s32 32, %v725
        %v727 = vshrl.u32 683565275, %v726
        %v728 = vshll.u32 683565275, %v725
        %v729 = vshrl.u32 2475754826, %v726
        %v730 = vor.u32 %v728, %v729
        %v731 = vshll.u32 2475754826, %v725
        %v732 = vshrl.u32 2131351028, %v726
        %v733 = vor.u32 %v731, %v732
        %v734 = vshll.u32 2131351028, %v725
        %v735 = vshrl.u32 2102212464, %v726
        %v736 = vor.u32 %v734, %v735
        %v737 = vshll.u32 2102212464, %v725
        %v738 = vshrl.u32 920167782, %v726
        %v739 = vor.u32 %v737, %v738
        %v740 = vshll.u32 920167782, %v725
        %v741 = vshrl.u32 1326507024, %v726
        %v742 = vor.u32 %v740, %v741
        %vm743 = vcmp.lt.s32.totalorder %v724, 1
        %vm744 = vcmp.lt.s32.totalorder %v724, 2
        %vm745 = vcmp.lt.s32.totalorder %v724, 3
        %vm746 = vcmp.lt.s32.totalorder %v724, 4
        %v747 = vsel %vm743, %v727, %v730
        %v748 = vsel %vm746, %v736, 2102212464
        %v749 = vsel %vm745, %v733, %v748
        %v750 = vsel %vm744, %v747, %v749
        %v751 = vsel %vm743, %v730, %v733
        %v752 = vsel %vm746, %v739, 920167782
        %v753 = vsel %vm745, %v736, %v752
        %v754 = vsel %vm744, %v751, %v753
        %v755 = vsel %vm743, %v733, %v736
        %v756 = vsel %vm746, %v742, 1326507024
        %v757 = vsel %vm745, %v739, %v756
        %v758 = vsel %vm744, %v755, %v757
        %v759 = vshll.u32 %v719, 8
        %v760 = vmul.u32.u64.compose %v759, %v758
        %v761 = vextract.low.u32 %v760
        %v762 = vextract.high.u32 %v760
        %v763 = vmul.u32.u64.compose %v759, %v754
        %v764 = vextract.low.u32 %v763
        %v765 = vextract.high.u32 %v763
        %v766 = vmul.u32 %v759, %v750
        %v767 = vadd.s32 %v762, %v764
        %vm768 = vc.u32 %v762, %v764
        %v769 = vadd.s32 %v765, 1
        %v770 = vsel %vm768, %v769, %v765
        %v771 = vadd.s32 %v766, %v770
        %v772 = vadd.s32 %v771, 536870912
        %v773 = vshrl.u32 %v772, 30
        %v774 = vshll.u32 %v773, 30
        %v775 = vsub.s32 %v771, %v774
        %vm776 = vcmp.lt.s32.totalorder %v775, 0
        %v777 = vsub.s32 0, %v775
        %v778 = vsel %vm776, %v777, %v775
        %v779 = vclz %v778
        %v780 = vsub.s32 %v779, 2
        %vm781 = vcmp.gt.s32.totalorder 0, %v780
        %v782 = vsel %vm781, 0, %v780
        %v783 = vsub.s32 32, %v782
        %v784 = vshll.u32 %v775, %v782
        %v785 = vshrl.u32 %v767, %v783
        %v786 = vor.u32 %v784, %v785
        %v787 = vsub.s32 4294967266, %v782
        %v788 = vadd.s32 %v787, 127
        %v789 = vshll.u32 %v788, 23
        %v790 = vor.u32 4788187, %v789
        %v791 = vand.u32 2147483647, %v790
        %v793 = vcvt.s32.f32 %v786
        %v794 = vmul.f32 %v793, %v791
        %v795 = vxor.u32 %v794, 2147483648
        %v796 = vsel %vm713, %v795, %v794
        %v797 = vsub.s32 4, %v773
        %v798 = vsel %vm713, %v797, %v773
        %v799 = vsel %vm712, %v599, %v796
        %v800 = vsel %vm712, 0, %v798
        %v801 = vcosq.f32.pop %v799
        %v802 = vsinq.f32.pop %v799
        %vm803 = vweird.f32 %v599
        %v804 = vand.u32 %v800, 3
        %vm805 = vcmp.lt.s32.totalorder %v804, 2
        %vm806 = vcmp.eq.s32.totalorder %v804, 0
        %v807 = vxor.u32 %v802, 2147483648
        %v808 = vsel %vm806, %v801, %v807
        %vm809 = vcmp.eq.s32.totalorder %v804, 2
        %v810 = vxor.u32 %v801, 2147483648
        %v811 = vsel %vm809, %v810, %v802
        %v812 = vsel %vm805, %v808, %v811
        %v813 = vsel %vm803, nan, %v812
        %v814 = vand.u32 2147483647, %v600
        %vm815 = vcmp.le.f32.partialorder %v814, 0.7853982
        %vm816 = vcmp.lt.s32.totalorder %v600, 0
        %v817 = vand.u32 %v600, 2139095040
        %v818 = vshrl.u32 %v817, 23
        %v819 = vsub.s32 %v818, 127
        %v820 = vand.u32 2147483647, %v600
        %v821 = vand.u32 %v820, 8388607
        %v822 = vor.u32 %v821, 8388608
        %v823 = vsub.s32 0, %v822
        %v824 = vadd.s32 %v819, 1
        %vm825 = vcmp.gt.s32.totalorder %v824, 0
        %v826 = vsel %vm825, %v824, 0
        %v827 = vshrl.u32 %v826, 5
        %v828 = vand.u32 %v826, 31
        %v829 = vsub.s32 32, %v828
        %v830 = vshrl.u32 683565275, %v829
        %v831 = vshll.u32 683565275, %v828
        %v832 = vshrl.u32 2475754826, %v829
        %v833 = vor.u32 %v831, %v832
        %v834 = vshll.u32 2475754826, %v828
        %v835 = vshrl.u32 2131351028, %v829
        %v836 = vor.u32 %v834, %v835
        %v837 = vshll.u32 2131351028, %v828
        %v838 = vshrl.u32 2102212464, %v829
        %v839 = vor.u32 %v837, %v838
        %v840 = vshll.u32 2102212464, %v828
        %v841 = vshrl.u32 920167782, %v829
        %v842 = vor.u32 %v840, %v841
        %v843 = vshll.u32 920167782, %v828
        %v844 = vshrl.u32 1326507024, %v829
        %v845 = vor.u32 %v843, %v844
        %vm846 = vcmp.lt.s32.totalorder %v827, 1
        %vm847 = vcmp.lt.s32.totalorder %v827, 2
        %vm848 = vcmp.lt.s32.totalorder %v827, 3
        %vm849 = vcmp.lt.s32.totalorder %v827, 4
        %v850 = vsel %vm846, %v830, %v833
        %v851 = vsel %vm849, %v839, 2102212464
        %v852 = vsel %vm848, %v836, %v851
        %v853 = vsel %vm847, %v850, %v852
        %v854 = vsel %vm846, %v833, %v836
        %v855 = vsel %vm849, %v842, 920167782
        %v856 = vsel %vm848, %v839, %v855
        %v857 = vsel %vm847, %v854, %v856
        %v858 = vsel %vm846, %v836, %v839
        %v859 = vsel %vm849, %v845, 1326507024
        %v860 = vsel %vm848, %v842, %v859
        %v861 = vsel %vm847, %v858, %v860
        %v862 = vshll.u32 %v822, 8
        %v863 = vmul.u32.u64.compose %v862, %v861
        %v864 = vextract.low.u32 %v863
        %v865 = vextract.high.u32 %v863
        %v866 = vmul.u32.u64.compose %v862, %v857
        %v867 = vextract.low.u32 %v866
        %v868 = vextract.high.u32 %v866
        %v869 = vmul.u32 %v862, %v853
        %v870 = vadd.s32 %v865, %v867
        %vm871 = vc.u32 %v865, %v867
        %v872 = vadd.s32 %v868, 1
        %v873 = vsel %vm871, %v872, %v868
        %v874 = vadd.s32 %v869, %v873
        %v875 = vadd.s32 %v874, 536870912
        %v876 = vshrl.u32 %v875, 30
        %v877 = vshll.u32 %v876, 30
        %v878 = vsub.s32 %v874, %v877
        %vm879 = vcmp.lt.s32.totalorder %v878, 0
        %v880 = vsub.s32 0, %v878
        %v881 = vsel %vm879, %v880, %v878
        %v882 = vclz %v881
        %v883 = vsub.s32 %v882, 2
        %vm884 = vcmp.gt.s32.totalorder 0, %v883
        %v885 = vsel %vm884, 0, %v883
        %v886 = vsub.s32 32, %v885
        %v887 = vshll.u32 %v878, %v885
        %v888 = vshrl.u32 %v870, %v886
        %v889 = vor.u32 %v887, %v888
        %v890 = vsub.s32 4294967266, %v885
        %v891 = vadd.s32 %v890, 127
        %v892 = vshll.u32 %v891, 23
        %v893 = vor.u32 4788187, %v892
        %v894 = vand.u32 2147483647, %v893
        %v896 = vcvt.s32.f32 %v889
        %v897 = vmul.f32 %v896, %v894
        %v898 = vxor.u32 %v897, 2147483648
        %v899 = vsel %vm816, %v898, %v897
        %v900 = vsub.s32 4, %v876
        %v901 = vsel %vm816, %v900, %v876
        %v902 = vsel %vm815, %v600, %v899
        %v903 = vsel %vm815, 0, %v901
        %v904 = vcosq.f32.pop %v902
        %v905 = vsinq.f32.pop %v902
        %vm906 = vweird.f32 %v600
        %v907 = vand.u32 %v903, 3
        %vm908 = vcmp.lt.s32.totalorder %v907, 2
        %vm909 = vcmp.eq.s32.totalorder %v907, 0
        %v910 = vxor.u32 %v905, 2147483648
        %v911 = vsel %vm909, %v904, %v910
        %vm912 = vcmp.eq.s32.totalorder %v907, 2
        %v913 = vxor.u32 %v904, 2147483648
        %v914 = vsel %vm912, %v913, %v905
        %v915 = vsel %vm908, %v911, %v914
        %v916 = vsel %vm906, nan, %v915
        %v917 = vand.u32 2147483647, %v601
        %vm918 = vcmp.le.f32.partialorder %v917, 0.7853982
        %vm919 = vcmp.lt.s32.totalorder %v601, 0
        %v920 = vand.u32 %v601, 2139095040
        %v921 = vshrl.u32 %v920, 23
        %v922 = vsub.s32 %v921, 127
        %v923 = vand.u32 2147483647, %v601
        %v924 = vand.u32 %v923, 8388607
        %v925 = vor.u32 %v924, 8388608
        %v926 = vsub.s32 0, %v925
        %v927 = vadd.s32 %v922, 1
        %vm928 = vcmp.gt.s32.totalorder %v927, 0
        %v929 = vsel %vm928, %v927, 0
        %v930 = vshrl.u32 %v929, 5
        %v931 = vand.u32 %v929, 31
        %v932 = vsub.s32 32, %v931
        %v933 = vshrl.u32 683565275, %v932
        %v934 = vshll.u32 683565275, %v931
        %v935 = vshrl.u32 2475754826, %v932
        %v936 = vor.u32 %v934, %v935
        %v937 = vshll.u32 2475754826, %v931
        %v938 = vshrl.u32 2131351028, %v932
        %v939 = vor.u32 %v937, %v938
        %v940 = vshll.u32 2131351028, %v931
        %v941 = vshrl.u32 2102212464, %v932
        %v942 = vor.u32 %v940, %v941
        %v943 = vshll.u32 2102212464, %v931
        %v944 = vshrl.u32 920167782, %v932
        %v945 = vor.u32 %v943, %v944
        %v946 = vshll.u32 920167782, %v931
        %v947 = vshrl.u32 1326507024, %v932
        %v948 = vor.u32 %v946, %v947
        %vm949 = vcmp.lt.s32.totalorder %v930, 1
        %vm950 = vcmp.lt.s32.totalorder %v930, 2
        %vm951 = vcmp.lt.s32.totalorder %v930, 3
        %vm952 = vcmp.lt.s32.totalorder %v930, 4
        %v953 = vsel %vm949, %v933, %v936
        %v954 = vsel %vm952, %v942, 2102212464
        %v955 = vsel %vm951, %v939, %v954
        %v956 = vsel %vm950, %v953, %v955
        %v957 = vsel %vm949, %v936, %v939
        %v958 = vsel %vm952, %v945, 920167782
        %v959 = vsel %vm951, %v942, %v958
        %v960 = vsel %vm950, %v957, %v959
        %v961 = vsel %vm949, %v939, %v942
        %v962 = vsel %vm952, %v948, 1326507024
        %v963 = vsel %vm951, %v945, %v962
        %v964 = vsel %vm950, %v961, %v963
        %v965 = vshll.u32 %v925, 8
        %v966 = vmul.u32.u64.compose %v965, %v964
        %v967 = vextract.low.u32 %v966
        %v968 = vextract.high.u32 %v966
        %v969 = vmul.u32.u64.compose %v965, %v960
        %v970 = vextract.low.u32 %v969
        %v971 = vextract.high.u32 %v969
        %v972 = vmul.u32 %v965, %v956
        %v973 = vadd.s32 %v968, %v970
        %vm974 = vc.u32 %v968, %v970
        %v975 = vadd.s32 %v971, 1
        %v976 = vsel %vm974, %v975, %v971
        %v977 = vadd.s32 %v972, %v976
        %v978 = vadd.s32 %v977, 536870912
        %v979 = vshrl.u32 %v978, 30
        %v980 = vshll.u32 %v979, 30
        %v981 = vsub.s32 %v977, %v980
        %vm982 = vcmp.lt.s32.totalorder %v981, 0
        %v983 = vsub.s32 0, %v981
        %v984 = vsel %vm982, %v983, %v981
        %v985 = vclz %v984
        %v986 = vsub.s32 %v985, 2
        %vm987 = vcmp.gt.s32.totalorder 0, %v986
        %v988 = vsel %vm987, 0, %v986
        %v989 = vsub.s32 32, %v988
        %v990 = vshll.u32 %v981, %v988
        %v991 = vshrl.u32 %v973, %v989
        %v992 = vor.u32 %v990, %v991
        %v993 = vsub.s32 4294967266, %v988
        %v994 = vadd.s32 %v993, 127
        %v995 = vshll.u32 %v994, 23
        %v996 = vor.u32 4788187, %v995
        %v997 = vand.u32 2147483647, %v996
        %v999 = vcvt.s32.f32 %v992
        %v1000 = vmul.f32 %v999, %v997
        %v1001 = vxor.u32 %v1000, 2147483648
        %v1002 = vsel %vm919, %v1001, %v1000
        %v1003 = vsub.s32 4, %v979
        %v1004 = vsel %vm919, %v1003, %v979
        %v1005 = vsel %vm918, %v601, %v1002
        %v1006 = vsel %vm918, 0, %v1004
        %v1007 = vcosq.f32.pop %v1005
        %v1008 = vsinq.f32.pop %v1005
        %vm1009 = vweird.f32 %v601
        %v1010 = vand.u32 %v1006, 3
        %vm1011 = vcmp.lt.s32.totalorder %v1010, 2
        %vm1012 = vcmp.eq.s32.totalorder %v1010, 0
        %v1013 = vxor.u32 %v1008, 2147483648
        %v1014 = vsel %vm1012, %v1007, %v1013
        %vm1015 = vcmp.eq.s32.totalorder %v1010, 2
        %v1016 = vxor.u32 %v1007, 2147483648
        %v1017 = vsel %vm1015, %v1016, %v1008
        %v1018 = vsel %vm1011, %v1014, %v1017
        %v1019 = vsel %vm1009, nan, %v1018
        %v1020 = vand.u32 2147483647, %v602
        %vm1021 = vcmp.le.f32.partialorder %v1020, 0.7853982
        %vm1022 = vcmp.lt.s32.totalorder %v602, 0
        %v1023 = vand.u32 %v602, 2139095040
        %v1024 = vshrl.u32 %v1023, 23
        %v1025 = vsub.s32 %v1024, 127
        %v1026 = vand.u32 2147483647, %v602
        %v1027 = vand.u32 %v1026, 8388607
        %v1028 = vor.u32 %v1027, 8388608
        %v1029 = vsub.s32 0, %v1028
        %v1030 = vadd.s32 %v1025, 1
        %vm1031 = vcmp.gt.s32.totalorder %v1030, 0
        %v1032 = vsel %vm1031, %v1030, 0
        %v1033 = vshrl.u32 %v1032, 5
        %v1034 = vand.u32 %v1032, 31
        %v1035 = vsub.s32 32, %v1034
        %v1036 = vshrl.u32 683565275, %v1035
        %v1037 = vshll.u32 683565275, %v1034
        %v1038 = vshrl.u32 2475754826, %v1035
        %v1039 = vor.u32 %v1037, %v1038
        %v1040 = vshll.u32 2475754826, %v1034
        %v1041 = vshrl.u32 2131351028, %v1035
        %v1042 = vor.u32 %v1040, %v1041
        %v1043 = vshll.u32 2131351028, %v1034
        %v1044 = vshrl.u32 2102212464, %v1035
        %v1045 = vor.u32 %v1043, %v1044
        %v1046 = vshll.u32 2102212464, %v1034
        %v1047 = vshrl.u32 920167782, %v1035
        %v1048 = vor.u32 %v1046, %v1047
        %v1049 = vshll.u32 920167782, %v1034
        %v1050 = vshrl.u32 1326507024, %v1035
        %v1051 = vor.u32 %v1049, %v1050
        %vm1052 = vcmp.lt.s32.totalorder %v1033, 1
        %vm1053 = vcmp.lt.s32.totalorder %v1033, 2
        %vm1054 = vcmp.lt.s32.totalorder %v1033, 3
        %vm1055 = vcmp.lt.s32.totalorder %v1033, 4
        %v1056 = vsel %vm1052, %v1036, %v1039
        %v1057 = vsel %vm1055, %v1045, 2102212464
        %v1058 = vsel %vm1054, %v1042, %v1057
        %v1059 = vsel %vm1053, %v1056, %v1058
        %v1060 = vsel %vm1052, %v1039, %v1042
        %v1061 = vsel %vm1055, %v1048, 920167782
        %v1062 = vsel %vm1054, %v1045, %v1061
        %v1063 = vsel %vm1053, %v1060, %v1062
        %v1064 = vsel %vm1052, %v1042, %v1045
        %v1065 = vsel %vm1055, %v1051, 1326507024
        %v1066 = vsel %vm1054, %v1048, %v1065
        %v1067 = vsel %vm1053, %v1064, %v1066
        %v1068 = vshll.u32 %v1028, 8
        %v1069 = vmul.u32.u64.compose %v1068, %v1067
        %v1070 = vextract.low.u32 %v1069
        %v1071 = vextract.high.u32 %v1069
        %v1072 = vmul.u32.u64.compose %v1068, %v1063
        %v1073 = vextract.low.u32 %v1072
        %v1074 = vextract.high.u32 %v1072
        %v1075 = vmul.u32 %v1068, %v1059
        %v1076 = vadd.s32 %v1071, %v1073
        %vm1077 = vc.u32 %v1071, %v1073
        %v1078 = vadd.s32 %v1074, 1
        %v1079 = vsel %vm1077, %v1078, %v1074
        %v1080 = vadd.s32 %v1075, %v1079
        %v1081 = vadd.s32 %v1080, 536870912
        %v1082 = vshrl.u32 %v1081, 30
        %v1083 = vshll.u32 %v1082, 30
        %v1084 = vsub.s32 %v1080, %v1083
        %vm1085 = vcmp.lt.s32.totalorder %v1084, 0
        %v1086 = vsub.s32 0, %v1084
        %v1087 = vsel %vm1085, %v1086, %v1084
        %v1088 = vclz %v1087
        %v1089 = vsub.s32 %v1088, 2
        %vm1090 = vcmp.gt.s32.totalorder 0, %v1089
        %v1091 = vsel %vm1090, 0, %v1089
        %v1092 = vsub.s32 32, %v1091
        %v1093 = vshll.u32 %v1084, %v1091
        %v1094 = vshrl.u32 %v1076, %v1092
        %v1095 = vor.u32 %v1093, %v1094
        %v1096 = vsub.s32 4294967266, %v1091
        %v1097 = vadd.s32 %v1096, 127
        %v1098 = vshll.u32 %v1097, 23
        %v1099 = vor.u32 4788187, %v1098
        %v1100 = vand.u32 2147483647, %v1099
        %v1102 = vcvt.s32.f32 %v1095
        %v1103 = vmul.f32 %v1102, %v1100
        %v1104 = vxor.u32 %v1103, 2147483648
        %v1105 = vsel %vm1022, %v1104, %v1103
        %v1106 = vsub.s32 4, %v1082
        %v1107 = vsel %vm1022, %v1106, %v1082
        %v1108 = vsel %vm1021, %v602, %v1105
        %v1109 = vsel %vm1021, 0, %v1107
        %v1110 = vcosq.f32.pop %v1108
        %v1111 = vsinq.f32.pop %v1108
        %vm1112 = vweird.f32 %v602
        %v1113 = vand.u32 %v1109, 3
        %vm1114 = vcmp.lt.s32.totalorder %v1113, 2
        %vm1115 = vcmp.eq.s32.totalorder %v1113, 0
        %v1116 = vxor.u32 %v1111, 2147483648
        %v1117 = vsel %vm1115, %v1110, %v1116
        %vm1118 = vcmp.eq.s32.totalorder %v1113, 2
        %v1119 = vxor.u32 %v1110, 2147483648
        %v1120 = vsel %vm1118, %v1119, %v1111
        %v1121 = vsel %vm1114, %v1117, %v1120
        %v1122 = vsel %vm1112, nan, %v1121
        %v1123 = vand.u32 2147483647, %v603
        %vm1124 = vcmp.le.f32.partialorder %v1123, 0.7853982
        %vm1125 = vcmp.lt.s32.totalorder %v603, 0
        %v1126 = vand.u32 %v603, 2139095040
        %v1127 = vshrl.u32 %v1126, 23
        %v1128 = vsub.s32 %v1127, 127
        %v1129 = vand.u32 2147483647, %v603
        %v1130 = vand.u32 %v1129, 8388607
        %v1131 = vor.u32 %v1130, 8388608
        %v1132 = vsub.s32 0, %v1131
        %v1133 = vadd.s32 %v1128, 1
        %vm1134 = vcmp.gt.s32.totalorder %v1133, 0
        %v1135 = vsel %vm1134, %v1133, 0
        %v1136 = vshrl.u32 %v1135, 5
        %v1137 = vand.u32 %v1135, 31
        %v1138 = vsub.s32 32, %v1137
        %v1139 = vshrl.u32 683565275, %v1138
        %v1140 = vshll.u32 683565275, %v1137
        %v1141 = vshrl.u32 2475754826, %v1138
        %v1142 = vor.u32 %v1140, %v1141
        %v1143 = vshll.u32 2475754826, %v1137
        %v1144 = vshrl.u32 2131351028, %v1138
        %v1145 = vor.u32 %v1143, %v1144
        %v1146 = vshll.u32 2131351028, %v1137
        %v1147 = vshrl.u32 2102212464, %v1138
        %v1148 = vor.u32 %v1146, %v1147
        %v1149 = vshll.u32 2102212464, %v1137
        %v1150 = vshrl.u32 920167782, %v1138
        %v1151 = vor.u32 %v1149, %v1150
        %v1152 = vshll.u32 920167782, %v1137
        %v1153 = vshrl.u32 1326507024, %v1138
        %v1154 = vor.u32 %v1152, %v1153
        %vm1155 = vcmp.lt.s32.totalorder %v1136, 1
        %vm1156 = vcmp.lt.s32.totalorder %v1136, 2
        %vm1157 = vcmp.lt.s32.totalorder %v1136, 3
        %vm1158 = vcmp.lt.s32.totalorder %v1136, 4
        %v1159 = vsel %vm1155, %v1139, %v1142
        %v1160 = vsel %vm1158, %v1148, 2102212464
        %v1161 = vsel %vm1157, %v1145, %v1160
        %v1162 = vsel %vm1156, %v1159, %v1161
        %v1163 = vsel %vm1155, %v1142, %v1145
        %v1164 = vsel %vm1158, %v1151, 920167782
        %v1165 = vsel %vm1157, %v1148, %v1164
        %v1166 = vsel %vm1156, %v1163, %v1165
        %v1167 = vsel %vm1155, %v1145, %v1148
        %v1168 = vsel %vm1158, %v1154, 1326507024
        %v1169 = vsel %vm1157, %v1151, %v1168
        %v1170 = vsel %vm1156, %v1167, %v1169
        %v1171 = vshll.u32 %v1131, 8
        %v1172 = vmul.u32.u64.compose %v1171, %v1170
        %v1173 = vextract.low.u32 %v1172
        %v1174 = vextract.high.u32 %v1172
        %v1175 = vmul.u32.u64.compose %v1171, %v1166
        %v1176 = vextract.low.u32 %v1175
        %v1177 = vextract.high.u32 %v1175
        %v1178 = vmul.u32 %v1171, %v1162
        %v1179 = vadd.s32 %v1174, %v1176
        %vm1180 = vc.u32 %v1174, %v1176
        %v1181 = vadd.s32 %v1177, 1
        %v1182 = vsel %vm1180, %v1181, %v1177
        %v1183 = vadd.s32 %v1178, %v1182
        %v1184 = vadd.s32 %v1183, 536870912
        %v1185 = vshrl.u32 %v1184, 30
        %v1186 = vshll.u32 %v1185, 30
        %v1187 = vsub.s32 %v1183, %v1186
        %vm1188 = vcmp.lt.s32.totalorder %v1187, 0
        %v1189 = vsub.s32 0, %v1187
        %v1190 = vsel %vm1188, %v1189, %v1187
        %v1191 = vclz %v1190
        %v1192 = vsub.s32 %v1191, 2
        %vm1193 = vcmp.gt.s32.totalorder 0, %v1192
        %v1194 = vsel %vm1193, 0, %v1192
        %v1195 = vsub.s32 32, %v1194
        %v1196 = vshll.u32 %v1187, %v1194
        %v1197 = vshrl.u32 %v1179, %v1195
        %v1198 = vor.u32 %v1196, %v1197
        %v1199 = vsub.s32 4294967266, %v1194
        %v1200 = vadd.s32 %v1199, 127
        %v1201 = vshll.u32 %v1200, 23
        %v1202 = vor.u32 4788187, %v1201
        %v1203 = vand.u32 2147483647, %v1202
        %v1205 = vcvt.s32.f32 %v1198
        %v1206 = vmul.f32 %v1205, %v1203
        %v1207 = vxor.u32 %v1206, 2147483648
        %v1208 = vsel %vm1125, %v1207, %v1206
        %v1209 = vsub.s32 4, %v1185
        %v1210 = vsel %vm1125, %v1209, %v1185
        %v1211 = vsel %vm1124, %v603, %v1208
        %v1212 = vsel %vm1124, 0, %v1210
        %v1213 = vcosq.f32.pop %v1211
        %v1214 = vsinq.f32.pop %v1211
        %vm1215 = vweird.f32 %v603
        %v1216 = vand.u32 %v1212, 3
        %vm1217 = vcmp.lt.s32.totalorder %v1216, 2
        %vm1218 = vcmp.eq.s32.totalorder %v1216, 0
        %v1219 = vxor.u32 %v1214, 2147483648
        %v1220 = vsel %vm1218, %v1213, %v1219
        %vm1221 = vcmp.eq.s32.totalorder %v1216, 2
        %v1222 = vxor.u32 %v1213, 2147483648
        %v1223 = vsel %vm1221, %v1222, %v1214
        %v1224 = vsel %vm1217, %v1220, %v1223
        %v1225 = vsel %vm1215, nan, %v1224
        %v1226 = vand.u32 2147483647, %v604
        %vm1227 = vcmp.le.f32.partialorder %v1226, 0.7853982
        %vm1228 = vcmp.lt.s32.totalorder %v604, 0
        %v1229 = vand.u32 %v604, 2139095040
        %v1230 = vshrl.u32 %v1229, 23
        %v1231 = vsub.s32 %v1230, 127
        %v1232 = vand.u32 2147483647, %v604
        %v1233 = vand.u32 %v1232, 8388607
        %v1234 = vor.u32 %v1233, 8388608
        %v1235 = vsub.s32 0, %v1234
        %v1236 = vadd.s32 %v1231, 1
        %vm1237 = vcmp.gt.s32.totalorder %v1236, 0
        %v1238 = vsel %vm1237, %v1236, 0
        %v1239 = vshrl.u32 %v1238, 5
        %v1240 = vand.u32 %v1238, 31
        %v1241 = vsub.s32 32, %v1240
        %v1242 = vshrl.u32 683565275, %v1241
        %v1243 = vshll.u32 683565275, %v1240
        %v1244 = vshrl.u32 2475754826, %v1241
        %v1245 = vor.u32 %v1243, %v1244
        %v1246 = vshll.u32 2475754826, %v1240
        %v1247 = vshrl.u32 2131351028, %v1241
        %v1248 = vor.u32 %v1246, %v1247
        %v1249 = vshll.u32 2131351028, %v1240
        %v1250 = vshrl.u32 2102212464, %v1241
        %v1251 = vor.u32 %v1249, %v1250
        %v1252 = vshll.u32 2102212464, %v1240
        %v1253 = vshrl.u32 920167782, %v1241
        %v1254 = vor.u32 %v1252, %v1253
        %v1255 = vshll.u32 920167782, %v1240
        %v1256 = vshrl.u32 1326507024, %v1241
        %v1257 = vor.u32 %v1255, %v1256
        %vm1258 = vcmp.lt.s32.totalorder %v1239, 1
        %vm1259 = vcmp.lt.s32.totalorder %v1239, 2
        %vm1260 = vcmp.lt.s32.totalorder %v1239, 3
        %vm1261 = vcmp.lt.s32.totalorder %v1239, 4
        %v1262 = vsel %vm1258, %v1242, %v1245
        %v1263 = vsel %vm1261, %v1251, 2102212464
        %v1264 = vsel %vm1260, %v1248, %v1263
        %v1265 = vsel %vm1259, %v1262, %v1264
        %v1266 = vsel %vm1258, %v1245, %v1248
        %v1267 = vsel %vm1261, %v1254, 920167782
        %v1268 = vsel %vm1260, %v1251, %v1267
        %v1269 = vsel %vm1259, %v1266, %v1268
        %v1270 = vsel %vm1258, %v1248, %v1251
        %v1271 = vsel %vm1261, %v1257, 1326507024
        %v1272 = vsel %vm1260, %v1254, %v1271
        %v1273 = vsel %vm1259, %v1270, %v1272
        %v1274 = vshll.u32 %v1234, 8
        %v1275 = vmul.u32.u64.compose %v1274, %v1273
        %v1276 = vextract.low.u32 %v1275
        %v1277 = vextract.high.u32 %v1275
        %v1278 = vmul.u32.u64.compose %v1274, %v1269
        %v1279 = vextract.low.u32 %v1278
        %v1280 = vextract.high.u32 %v1278
        %v1281 = vmul.u32 %v1274, %v1265
        %v1282 = vadd.s32 %v1277, %v1279
        %vm1283 = vc.u32 %v1277, %v1279
        %v1284 = vadd.s32 %v1280, 1
        %v1285 = vsel %vm1283, %v1284, %v1280
        %v1286 = vadd.s32 %v1281, %v1285
        %v1287 = vadd.s32 %v1286, 536870912
        %v1288 = vshrl.u32 %v1287, 30
        %v1289 = vshll.u32 %v1288, 30
        %v1290 = vsub.s32 %v1286, %v1289
        %vm1291 = vcmp.lt.s32.totalorder %v1290, 0
        %v1292 = vsub.s32 0, %v1290
        %v1293 = vsel %vm1291, %v1292, %v1290
        %v1294 = vclz %v1293
        %v1295 = vsub.s32 %v1294, 2
        %vm1296 = vcmp.gt.s32.totalorder 0, %v1295
        %v1297 = vsel %vm1296, 0, %v1295
        %v1298 = vsub.s32 32, %v1297
        %v1299 = vshll.u32 %v1290, %v1297
        %v1300 = vshrl.u32 %v1282, %v1298
        %v1301 = vor.u32 %v1299, %v1300
        %v1302 = vsub.s32 4294967266, %v1297
        %v1303 = vadd.s32 %v1302, 127
        %v1304 = vshll.u32 %v1303, 23
        %v1305 = vor.u32 4788187, %v1304
        %v1306 = vand.u32 2147483647, %v1305
        %v1308 = vcvt.s32.f32 %v1301
        %v1309 = vmul.f32 %v1308, %v1306
        %v1310 = vxor.u32 %v1309, 2147483648
        %v1311 = vsel %vm1228, %v1310, %v1309
        %v1312 = vsub.s32 4, %v1288
        %v1313 = vsel %vm1228, %v1312, %v1288
        %v1314 = vsel %vm1227, %v604, %v1311
        %v1315 = vsel %vm1227, 0, %v1313
        %v1316 = vcosq.f32.pop %v1314
        %v1317 = vsinq.f32.pop %v1314
        %vm1318 = vweird.f32 %v604
        %v1319 = vand.u32 %v1315, 3
        %vm1320 = vcmp.lt.s32.totalorder %v1319, 2
        %vm1321 = vcmp.eq.s32.totalorder %v1319, 0
        %v1322 = vxor.u32 %v1317, 2147483648
        %v1323 = vsel %vm1321, %v1316, %v1322
        %vm1324 = vcmp.eq.s32.totalorder %v1319, 2
        %v1325 = vxor.u32 %v1316, 2147483648
        %v1326 = vsel %vm1324, %v1325, %v1317
        %v1327 = vsel %vm1320, %v1323, %v1326
        %v1328 = vsel %vm1318, nan, %v1327
        %v1329 = vand.u32 2147483647, %v605
        %vm1330 = vcmp.le.f32.partialorder %v1329, 0.7853982
        %vm1331 = vcmp.lt.s32.totalorder %v605, 0
        %v1332 = vand.u32 %v605, 2139095040
        %v1333 = vshrl.u32 %v1332, 23
        %v1334 = vsub.s32 %v1333, 127
        %v1335 = vand.u32 2147483647, %v605
        %v1336 = vand.u32 %v1335, 8388607
        %v1337 = vor.u32 %v1336, 8388608
        %v1338 = vsub.s32 0, %v1337
        %v1339 = vadd.s32 %v1334, 1
        %vm1340 = vcmp.gt.s32.totalorder %v1339, 0
        %v1341 = vsel %vm1340, %v1339, 0
        %v1342 = vshrl.u32 %v1341, 5
        %v1343 = vand.u32 %v1341, 31
        %v1344 = vsub.s32 32, %v1343
        %v1345 = vshrl.u32 683565275, %v1344
        %v1346 = vshll.u32 683565275, %v1343
        %v1347 = vshrl.u32 2475754826, %v1344
        %v1348 = vor.u32 %v1346, %v1347
        %v1349 = vshll.u32 2475754826, %v1343
        %v1350 = vshrl.u32 2131351028, %v1344
        %v1351 = vor.u32 %v1349, %v1350
        %v1352 = vshll.u32 2131351028, %v1343
        %v1353 = vshrl.u32 2102212464, %v1344
        %v1354 = vor.u32 %v1352, %v1353
        %v1355 = vshll.u32 2102212464, %v1343
        %v1356 = vshrl.u32 920167782, %v1344
        %v1357 = vor.u32 %v1355, %v1356
        %v1358 = vshll.u32 920167782, %v1343
        %v1359 = vshrl.u32 1326507024, %v1344
        %v1360 = vor.u32 %v1358, %v1359
        %vm1361 = vcmp.lt.s32.totalorder %v1342, 1
        %vm1362 = vcmp.lt.s32.totalorder %v1342, 2
        %vm1363 = vcmp.lt.s32.totalorder %v1342, 3
        %vm1364 = vcmp.lt.s32.totalorder %v1342, 4
        %v1365 = vsel %vm1361, %v1345, %v1348
        %v1366 = vsel %vm1364, %v1354, 2102212464
        %v1367 = vsel %vm1363, %v1351, %v1366
        %v1368 = vsel %vm1362, %v1365, %v1367
        %v1369 = vsel %vm1361, %v1348, %v1351
        %v1370 = vsel %vm1364, %v1357, 920167782
        %v1371 = vsel %vm1363, %v1354, %v1370
        %v1372 = vsel %vm1362, %v1369, %v1371
        %v1373 = vsel %vm1361, %v1351, %v1354
        %v1374 = vsel %vm1364, %v1360, 1326507024
        %v1375 = vsel %vm1363, %v1357, %v1374
        %v1376 = vsel %vm1362, %v1373, %v1375
        %v1377 = vshll.u32 %v1337, 8
        %v1378 = vmul.u32.u64.compose %v1377, %v1376
        %v1379 = vextract.low.u32 %v1378
        %v1380 = vextract.high.u32 %v1378
        %v1381 = vmul.u32.u64.compose %v1377, %v1372
        %v1382 = vextract.low.u32 %v1381
        %v1383 = vextract.high.u32 %v1381
        %v1384 = vmul.u32 %v1377, %v1368
        %v1385 = vadd.s32 %v1380, %v1382
        %vm1386 = vc.u32 %v1380, %v1382
        %v1387 = vadd.s32 %v1383, 1
        %v1388 = vsel %vm1386, %v1387, %v1383
        %v1389 = vadd.s32 %v1384, %v1388
        %v1390 = vadd.s32 %v1389, 536870912
        %v1391 = vshrl.u32 %v1390, 30
        %v1392 = vshll.u32 %v1391, 30
        %v1393 = vsub.s32 %v1389, %v1392
        %vm1394 = vcmp.lt.s32.totalorder %v1393, 0
        %v1395 = vsub.s32 0, %v1393
        %v1396 = vsel %vm1394, %v1395, %v1393
        %v1397 = vclz %v1396
        %v1398 = vsub.s32 %v1397, 2
        %vm1399 = vcmp.gt.s32.totalorder 0, %v1398
        %v1400 = vsel %vm1399, 0, %v1398
        %v1401 = vsub.s32 32, %v1400
        %v1402 = vshll.u32 %v1393, %v1400
        %v1403 = vshrl.u32 %v1385, %v1401
        %v1404 = vor.u32 %v1402, %v1403
        %v1405 = vsub.s32 4294967266, %v1400
        %v1406 = vadd.s32 %v1405, 127
        %v1407 = vshll.u32 %v1406, 23
        %v1408 = vor.u32 4788187, %v1407
        %v1409 = vand.u32 2147483647, %v1408
        %v1411 = vcvt.s32.f32 %v1404
        %v1412 = vmul.f32 %v1411, %v1409
        %v1413 = vxor.u32 %v1412, 2147483648
        %v1414 = vsel %vm1331, %v1413, %v1412
        %v1415 = vsub.s32 4, %v1391
        %v1416 = vsel %vm1331, %v1415, %v1391
        %v1417 = vsel %vm1330, %v605, %v1414
        %v1418 = vsel %vm1330, 0, %v1416
        %v1419 = vcosq.f32.pop %v1417
        %v1420 = vsinq.f32.pop %v1417
        %vm1421 = vweird.f32 %v605
        %v1422 = vand.u32 %v1418, 3
        %vm1423 = vcmp.lt.s32.totalorder %v1422, 2
        %vm1424 = vcmp.eq.s32.totalorder %v1422, 0
        %v1425 = vxor.u32 %v1420, 2147483648
        %v1426 = vsel %vm1424, %v1419, %v1425
        %vm1427 = vcmp.eq.s32.totalorder %v1422, 2
        %v1428 = vxor.u32 %v1419, 2147483648
        %v1429 = vsel %vm1427, %v1428, %v1420
        %v1430 = vsel %vm1423, %v1426, %v1429
        %v1431 = vsel %vm1421, nan, %v1430
        %v1432 = vand.u32 2147483647, %v606
        %vm1433 = vcmp.le.f32.partialorder %v1432, 0.7853982
        %vm1434 = vcmp.lt.s32.totalorder %v606, 0
        %v1435 = vand.u32 %v606, 2139095040
        %v1436 = vshrl.u32 %v1435, 23
        %v1437 = vsub.s32 %v1436, 127
        %v1438 = vand.u32 2147483647, %v606
        %v1439 = vand.u32 %v1438, 8388607
        %v1440 = vor.u32 %v1439, 8388608
        %v1441 = vsub.s32 0, %v1440
        %v1442 = vadd.s32 %v1437, 1
        %vm1443 = vcmp.gt.s32.totalorder %v1442, 0
        %v1444 = vsel %vm1443, %v1442, 0
        %v1445 = vshrl.u32 %v1444, 5
        %v1446 = vand.u32 %v1444, 31
        %v1447 = vsub.s32 32, %v1446
        %v1448 = vshrl.u32 683565275, %v1447
        %v1449 = vshll.u32 683565275, %v1446
        %v1450 = vshrl.u32 2475754826, %v1447
        %v1451 = vor.u32 %v1449, %v1450
        %v1452 = vshll.u32 2475754826, %v1446
        %v1453 = vshrl.u32 2131351028, %v1447
        %v1454 = vor.u32 %v1452, %v1453
        %v1455 = vshll.u32 2131351028, %v1446
        %v1456 = vshrl.u32 2102212464, %v1447
        %v1457 = vor.u32 %v1455, %v1456
        %v1458 = vshll.u32 2102212464, %v1446
        %v1459 = vshrl.u32 920167782, %v1447
        %v1460 = vor.u32 %v1458, %v1459
        %v1461 = vshll.u32 920167782, %v1446
        %v1462 = vshrl.u32 1326507024, %v1447
        %v1463 = vor.u32 %v1461, %v1462
        %vm1464 = vcmp.lt.s32.totalorder %v1445, 1
        %vm1465 = vcmp.lt.s32.totalorder %v1445, 2
        %vm1466 = vcmp.lt.s32.totalorder %v1445, 3
        %vm1467 = vcmp.lt.s32.totalorder %v1445, 4
        %v1468 = vsel %vm1464, %v1448, %v1451
        %v1469 = vsel %vm1467, %v1457, 2102212464
        %v1470 = vsel %vm1466, %v1454, %v1469
        %v1471 = vsel %vm1465, %v1468, %v1470
        %v1472 = vsel %vm1464, %v1451, %v1454
        %v1473 = vsel %vm1467, %v1460, 920167782
        %v1474 = vsel %vm1466, %v1457, %v1473
        %v1475 = vsel %vm1465, %v1472, %v1474
        %v1476 = vsel %vm1464, %v1454, %v1457
        %v1477 = vsel %vm1467, %v1463, 1326507024
        %v1478 = vsel %vm1466, %v1460, %v1477
        %v1479 = vsel %vm1465, %v1476, %v1478
        %v1480 = vshll.u32 %v1440, 8
        %v1481 = vmul.u32.u64.compose %v1480, %v1479
        %v1482 = vextract.low.u32 %v1481
        %v1483 = vextract.high.u32 %v1481
        %v1484 = vmul.u32.u64.compose %v1480, %v1475
        %v1485 = vextract.low.u32 %v1484
        %v1486 = vextract.high.u32 %v1484
        %v1487 = vmul.u32 %v1480, %v1471
        %v1488 = vadd.s32 %v1483, %v1485
        %vm1489 = vc.u32 %v1483, %v1485
        %v1490 = vadd.s32 %v1486, 1
        %v1491 = vsel %vm1489, %v1490, %v1486
        %v1492 = vadd.s32 %v1487, %v1491
        %v1493 = vadd.s32 %v1492, 536870912
        %v1494 = vshrl.u32 %v1493, 30
        %v1495 = vshll.u32 %v1494, 30
        %v1496 = vsub.s32 %v1492, %v1495
        %vm1497 = vcmp.lt.s32.totalorder %v1496, 0
        %v1498 = vsub.s32 0, %v1496
        %v1499 = vsel %vm1497, %v1498, %v1496
        %v1500 = vclz %v1499
        %v1501 = vsub.s32 %v1500, 2
        %vm1502 = vcmp.gt.s32.totalorder 0, %v1501
        %v1503 = vsel %vm1502, 0, %v1501
        %v1504 = vsub.s32 32, %v1503
        %v1505 = vshll.u32 %v1496, %v1503
        %v1506 = vshrl.u32 %v1488, %v1504
        %v1507 = vor.u32 %v1505, %v1506
        %v1508 = vsub.s32 4294967266, %v1503
        %v1509 = vadd.s32 %v1508, 127
        %v1510 = vshll.u32 %v1509, 23
        %v1511 = vor.u32 4788187, %v1510
        %v1512 = vand.u32 2147483647, %v1511
        %v1514 = vcvt.s32.f32 %v1507
        %v1515 = vmul.f32 %v1514, %v1512
        %v1516 = vxor.u32 %v1515, 2147483648
        %v1517 = vsel %vm1434, %v1516, %v1515
        %v1518 = vsub.s32 4, %v1494
        %v1519 = vsel %vm1434, %v1518, %v1494
        %v1520 = vsel %vm1433, %v606, %v1517
        %v1521 = vsel %vm1433, 0, %v1519
        %v1522 = vcosq.f32.pop %v1520
        %v1523 = vsinq.f32.pop %v1520
        %vm1524 = vweird.f32 %v606
        %v1525 = vand.u32 %v1521, 3
        %vm1526 = vcmp.lt.s32.totalorder %v1525, 2
        %vm1527 = vcmp.eq.s32.totalorder %v1525, 0
        %v1528 = vxor.u32 %v1523, 2147483648
        %v1529 = vsel %vm1527, %v1522, %v1528
        %vm1530 = vcmp.eq.s32.totalorder %v1525, 2
        %v1531 = vxor.u32 %v1522, 2147483648
        %v1532 = vsel %vm1530, %v1531, %v1523
        %v1533 = vsel %vm1526, %v1529, %v1532
        %v1534 = vsel %vm1524, nan, %v1533
        %v1535 = vand.u32 2147483647, %v607
        %vm1536 = vcmp.le.f32.partialorder %v1535, 0.7853982
        %vm1537 = vcmp.lt.s32.totalorder %v607, 0
        %v1538 = vand.u32 %v607, 2139095040
        %v1539 = vshrl.u32 %v1538, 23
        %v1540 = vsub.s32 %v1539, 127
        %v1541 = vand.u32 2147483647, %v607
        %v1542 = vand.u32 %v1541, 8388607
        %v1543 = vor.u32 %v1542, 8388608
        %v1544 = vsub.s32 0, %v1543
        %v1545 = vadd.s32 %v1540, 1
        %vm1546 = vcmp.gt.s32.totalorder %v1545, 0
        %v1547 = vsel %vm1546, %v1545, 0
        %v1548 = vshrl.u32 %v1547, 5
        %v1549 = vand.u32 %v1547, 31
        %v1550 = vsub.s32 32, %v1549
        %v1551 = vshrl.u32 683565275, %v1550
        %v1552 = vshll.u32 683565275, %v1549
        %v1553 = vshrl.u32 2475754826, %v1550
        %v1554 = vor.u32 %v1552, %v1553
        %v1555 = vshll.u32 2475754826, %v1549
        %v1556 = vshrl.u32 2131351028, %v1550
        %v1557 = vor.u32 %v1555, %v1556
        %v1558 = vshll.u32 2131351028, %v1549
        %v1559 = vshrl.u32 2102212464, %v1550
        %v1560 = vor.u32 %v1558, %v1559
        %v1561 = vshll.u32 2102212464, %v1549
        %v1562 = vshrl.u32 920167782, %v1550
        %v1563 = vor.u32 %v1561, %v1562
        %v1564 = vshll.u32 920167782, %v1549
        %v1565 = vshrl.u32 1326507024, %v1550
        %v1566 = vor.u32 %v1564, %v1565
        %vm1567 = vcmp.lt.s32.totalorder %v1548, 1
        %vm1568 = vcmp.lt.s32.totalorder %v1548, 2
        %vm1569 = vcmp.lt.s32.totalorder %v1548, 3
        %vm1570 = vcmp.lt.s32.totalorder %v1548, 4
        %v1571 = vsel %vm1567, %v1551, %v1554
        %v1572 = vsel %vm1570, %v1560, 2102212464
        %v1573 = vsel %vm1569, %v1557, %v1572
        %v1574 = vsel %vm1568, %v1571, %v1573
        %v1575 = vsel %vm1567, %v1554, %v1557
        %v1576 = vsel %vm1570, %v1563, 920167782
        %v1577 = vsel %vm1569, %v1560, %v1576
        %v1578 = vsel %vm1568, %v1575, %v1577
        %v1579 = vsel %vm1567, %v1557, %v1560
        %v1580 = vsel %vm1570, %v1566, 1326507024
        %v1581 = vsel %vm1569, %v1563, %v1580
        %v1582 = vsel %vm1568, %v1579, %v1581
        %v1583 = vshll.u32 %v1543, 8
        %v1584 = vmul.u32.u64.compose %v1583, %v1582
        %v1585 = vextract.low.u32 %v1584
        %v1586 = vextract.high.u32 %v1584
        %v1587 = vmul.u32.u64.compose %v1583, %v1578
        %v1588 = vextract.low.u32 %v1587
        %v1589 = vextract.high.u32 %v1587
        %v1590 = vmul.u32 %v1583, %v1574
        %v1591 = vadd.s32 %v1586, %v1588
        %vm1592 = vc.u32 %v1586, %v1588
        %v1593 = vadd.s32 %v1589, 1
        %v1594 = vsel %vm1592, %v1593, %v1589
        %v1595 = vadd.s32 %v1590, %v1594
        %v1596 = vadd.s32 %v1595, 536870912
        %v1597 = vshrl.u32 %v1596, 30
        %v1598 = vshll.u32 %v1597, 30
        %v1599 = vsub.s32 %v1595, %v1598
        %vm1600 = vcmp.lt.s32.totalorder %v1599, 0
        %v1601 = vsub.s32 0, %v1599
        %v1602 = vsel %vm1600, %v1601, %v1599
        %v1603 = vclz %v1602
        %v1604 = vsub.s32 %v1603, 2
        %vm1605 = vcmp.gt.s32.totalorder 0, %v1604
        %v1606 = vsel %vm1605, 0, %v1604
        %v1607 = vsub.s32 32, %v1606
        %v1608 = vshll.u32 %v1599, %v1606
        %v1609 = vshrl.u32 %v1591, %v1607
        %v1610 = vor.u32 %v1608, %v1609
        %v1611 = vsub.s32 4294967266, %v1606
        %v1612 = vadd.s32 %v1611, 127
        %v1613 = vshll.u32 %v1612, 23
        %v1614 = vor.u32 4788187, %v1613
        %v1615 = vand.u32 2147483647, %v1614
        %v1617 = vcvt.s32.f32 %v1610
        %v1618 = vmul.f32 %v1617, %v1615
        %v1619 = vxor.u32 %v1618, 2147483648
        %v1620 = vsel %vm1537, %v1619, %v1618
        %v1621 = vsub.s32 4, %v1597
        %v1622 = vsel %vm1537, %v1621, %v1597
        %v1623 = vsel %vm1536, %v607, %v1620
        %v1624 = vsel %vm1536, 0, %v1622
        %v1625 = vcosq.f32.pop %v1623
        %v1626 = vsinq.f32.pop %v1623
        %vm1627 = vweird.f32 %v607
        %v1628 = vand.u32 %v1624, 3
        %vm1629 = vcmp.lt.s32.totalorder %v1628, 2
        %vm1630 = vcmp.eq.s32.totalorder %v1628, 0
        %v1631 = vxor.u32 %v1626, 2147483648
        %v1632 = vsel %vm1630, %v1625, %v1631
        %vm1633 = vcmp.eq.s32.totalorder %v1628, 2
        %v1634 = vxor.u32 %v1625, 2147483648
        %v1635 = vsel %vm1633, %v1634, %v1626
        %v1636 = vsel %vm1629, %v1632, %v1635
        %v1637 = vsel %vm1627, nan, %v1636
        %v1638 = vmul.f32 %v710, 0.35355338
        %v1639 = vmul.f32 %v813, 0.35355338
        %v1640 = vmul.f32 %v916, 0.35355338
        %v1641 = vmul.f32 %v1019, 0.35355338
        %v1642 = vmul.f32 %v1122, 0.35355338
        %v1643 = vmul.f32 %v1225, 0.35355338
        %v1644 = vmul.f32 %v1328, 0.35355338
        %v1645 = vmul.f32 %v1431, 0.35355338
        %v1646 = vmul.f32 %v1534, 0.35355338
        %v1647 = vmul.f32 %v1637, 0.35355338
        %1648 = vst [vmem:[%s176] sm:$0xff] %v1638
        %1649 = vst [vmem:[%s176 + $0x8] sm:$0xff] %v1639
        %1650 = vst [vmem:[%s176 + $0x10] sm:$0xff] %v1640
        %1651 = vst [vmem:[%s176 + $0x18] sm:$0xff] %v1641
        %1652 = vst [vmem:[%s176 + $0x20] sm:$0xff] %v1642
        %1653 = vst [vmem:[%s176 + $0x28] sm:$0xff] %v1643
        %1654 = vst [vmem:[%s176 + $0x30] sm:$0xff] %v1644
        %1655 = vst [vmem:[%s176 + $0x38] sm:$0xff] %v1645
        %1656 = vst [vmem:[%s176 + $0x40] sm:$0xff] %v1646
        %1657 = vst [vmem:[%s176 + $0x48] sm:$0xff] %v1647
        %s1658 = sand.u32 %s93, 1
        %s1659 = scalar_lea.sflag [#allocation3], %s1658
        %s1660 = sand.u32 %s93, 1
        %s1661 = smul.addr %s1660, 80
        %s1662 = scalar_lea.vmem [#allocation2], %s1661
        // Predicated region
        $region33: #{tpu_custom_call.1} parent=31 // pred_check
          %p1663 = pneg %p103
        $region34: #{tpu_custom_call.1} parent=31 // pred_check_branch
          %1665 = sbr.rel (%p1663) target = $region36
        $region35: #{tpu_custom_call.1} parent=31 // pred_region
          %s1666 = smul.u32 10, %s17
          %s1667 = ssub.s32 19, %s1666
          %p1668 = scmp.lt.s32.totalorder %s1667, 10
          %s1669 = scalar_select %p1668, %s1667, 10
          %s1670 = smul.u32 128, %s1669
          %s1672 = ssub.s32 1280, %s1670
          %1673 = vsyncadd %s1659, %s1672
          %p1674 = scmp.ne.s32.totalorder 0, %s1670
          %s1675 = smul.addr %s1666, 128
          %s1676 = scalar_lea.hbm %s3, %s1675
          %s1677 = smul.u32 8, %s1669
          %s1678 = sshll.u32 %s1662, 4
          %s1679 = int_to_ptr.vmem [resolvable:$true] %s1678
          %s1680 = sshll.u32 %s1677, 4
          %1684 = dma.vmem_to_hbm [thread:$0]  (%p1674), %s1679, %s1680, %s1676, %s1659, 128, 128, 8
        $region36: #{tpu_custom_call.1} parent=31 // pred_fallthru
          _
      $region32: #{tpu_custom_call.1} parent=5 // pred_fallthru
        _
      %p1685 = scmp.le.s32.totalorder 2, %s12
      // Predicated region
      $region37: #{tpu_custom_call.1} parent=5 // pred_check
        %p1686 = pneg %p1685
      $region38: #{tpu_custom_call.1} parent=5 // pred_check_branch
        %1688 = sbr.rel (%p1686) target = $region40
      $region39: #{tpu_custom_call.1} parent=5 // pred_region
        %s1689 = ssub.s32 %s12, 2
        // Predicated region
        $region41: #{tpu_custom_call.1} parent=39 // pred_check
          %p1690 = pneg %p109
        $region42: #{tpu_custom_call.1} parent=39 // pred_check_branch
          %1692 = sbr.rel (%p1690) target = $region44
        $region43: #{tpu_custom_call.1} parent=39 // pred_region
          %s1693 = sand.u32 %s94, 1
          %s1694 = scalar_lea.sflag [#allocation3], %s1693
          %s1695 = sand.u32 %s94, 1
          %s1696 = smul.addr %s1695, 80
          %s1697 = scalar_lea.vmem [#allocation2], %s1696
          %1698 = dma.done %s1694, 1280
        $region44: #{tpu_custom_call.1} parent=39 // pred_fallthru
          _
      $region40: #{tpu_custom_call.1} parent=5 // pred_fallthru
        _
    $region6: #{tpu_custom_call.1} parent=1 // loop_footer
      %s16 = sadd.s32 1, %s12
    $region7: #{tpu_custom_call.1} parent=1 // loop_footer_branch
      %11 = sbr.rel target = $region3
    $region8: #{tpu_custom_call.1} parent=1 // loop_exit
      _
    %1699 = vsyncpa [#allocation3], 1
    %s1700 = scalar_lea.sflag [#allocation3], 1
    %1701 = vsyncpa %s1700, 1

</llo_original>
